<compile_context>
chip_gen: v6e
topology: v6e:2x2x1
jax: 0.10.0
libtpu: 0.0.40
codegen_flags: <defaults>
</compile_context>

<pallas_src>
import functools

import jax
import jax.numpy as jnp
import numpy as np
from jax import lax
from jax.experimental import pallas as pl
from jax.experimental.pallas import tpu as pltpu

# Matmul-operand dtype (accumulation is always f32).
COMPUTE_DTYPE = jnp.bfloat16

_MIN_VMEM_LIMIT = 16 * 1024 * 1024
_MAX_VMEM_LIMIT = 48 * 1024 * 1024   # <= v7x 64 MiB physical; harmless on v5e/v6e (128 MiB)


def _sigmoid(x):
    return 1.0 / (1.0 + jnp.exp(-x))


def _compiler_params(semantics, footprint_bytes):
    limit = int(min(max(4 * footprint_bytes, _MIN_VMEM_LIMIT), _MAX_VMEM_LIMIT))
    return pltpu.CompilerParams(dimension_semantics=semantics, vmem_limit_bytes=limit)


# ============================================================================= LSTM layer kernel
def _lstm_layer_kernel(x_ref, w_ih_ref, w_hh_ref, b_ref, h0_ref, c0_ref,
                       hseq_ref, hn_ref, cn_ref,
                       h_scr, c_scr, xp_scr, *, unroll):
    """One direction x one time chunk of an LSTM layer.

    x_ref:    (P, t_chunk*B, I)  input feature parts, rows ordered (time, batch)
    w_ih_ref: (1, P, I, 4H)      per-part transposed input weights for this direction
    w_hh_ref: (1, H, 4H)         transposed recurrent weights
    b_ref:    (1, 1, 4H) f32     combined bias
    h0/c0:    (1, B, H)  f32     initial state for this direction
    hseq_ref: (1, t_chunk, B, H) per-chunk hidden sequence output (compute dtype)
    hn/cn:    (1, B, H)  f32     final state (written on the last chunk only)
    scratch:  h_scr/c_scr (B, H) f32 carry, xp_scr (t_chunk*B, 4H) f32 projected inputs
    """
    n_parts = x_ref.shape[0]
    _, t_chunk, batch, hidden = hseq_ref.shape

    d = pl.program_id(0)                 # direction; parallel axis (split across TCs on v7x)
    c = pl.program_id(1)                 # time chunk; sequential recurrence

    @pl.when(c == 0)
    def _():
        h_scr[...] = h0_ref[0]
        c_scr[...] = c0_ref[0]

    # ---- Hoisted input projection: ONE large MXU matmul per feature part per chunk, entirely
    # off the serial recurrent path.  Bias is broadcast/added once per chunk, not per step.
    xp = jnp.dot(x_ref[0], w_ih_ref[0, 0], preferred_element_type=jnp.float32)
    for p in range(1, n_parts):
        xp = xp + jnp.dot(x_ref[p], w_ih_ref[0, p], preferred_element_type=jnp.float32)
    xp_scr[...] = xp + b_ref[0]                       # (t_chunk*B, 4H) f32

    w_hh = w_hh_ref[0]                                # (H, 4H) loop-invariant

    def step(i, carry):
        h, c_state = carry
        # Forward direction walks 0..t_chunk-1; reverse walks t_chunk-1..0 (its chunks are
        # already delivered in reversed block order by the BlockSpec index_map).
        idx = i + d * (t_chunk - 1 - 2 * i)
        row = pl.multiple_of(idx * batch, batch)
        gates = (jnp.dot(h.astype(w_hh.dtype), w_hh, preferred_element_type=jnp.float32)
                 + xp_scr[pl.ds(row, batch), :])
        # NOTE: for production choose H as a multiple of 128 (and B a multiple of 8) so these
        # gate slices and the hseq store below are unmasked lane/sublane-aligned ops.
        i_g = _sigmoid(gates[:, 0 * hidden:1 * hidden])
        f_g = _sigmoid(gates[:, 1 * hidden:2 * hidden])
        g_g = jnp.tanh(gates[:, 2 * hidden:3 * hidden])
        o_g = _sigmoid(gates[:, 3 * hidden:4 * hidden])
        c_new = f_g * c_state + i_g * g_g
        h_new = o_g * jnp.tanh(c_new)
        hseq_ref[0, idx] = h_new.astype(hseq_ref.dtype)
        return (h_new, c_new)

    h_fin, c_fin = lax.fori_loop(0, t_chunk, step, (h_scr[...], c_scr[...]), unroll=unroll)

    # carry recurrent state to this direction's next time chunk
    h_scr[...] = h_fin
    c_scr[...] = c_fin

    # final state written once, on this direction's last chunk only
    @pl.when(c == pl.num_programs(1) - 1)
    def _():
        hn_ref[0] = h_fin
        cn_ref[0] = c_fin


def _pick_time_chunk(seq_len, batch, n_parts, in_dim, hidden, dbytes,
                     budget_bytes=8 * 1024 * 1024, max_chunk=512):
    """Largest time chunk (divisor of S) whose double-buffered block footprint fits the budget
    and whose (P, t*B, I) input block satisfies the (8,128) block-shape rule."""
    def footprint(t):
        x_blk = n_parts * t * batch * in_dim * dbytes
        hs_blk = t * batch * hidden * dbytes
        xp_scr = t * batch * 4 * hidden * 4
        w_blk = (n_parts * in_dim + hidden + 1) * 4 * hidden * dbytes
        state = 6 * batch * hidden * 4
        return 2 * (x_blk + hs_blk + w_blk) + xp_scr + state

    valid = [t for t in range(1, seq_len + 1)
             if seq_len % t == 0
             and (t == seq_len or (t * batch) % 8 == 0)
             and (t <= max_chunk or t == seq_len)]
    fitting = [t for t in valid if footprint(t) <= budget_bytes]
    if fitting:
        t = max(fitting)
    elif valid:
        t = min(valid)   # TODO(synk): pad S and mask the tail instead of tiny chunks here.
    else:
        t = seq_len
    return t, footprint(t)


def lstm_layer_pallas(x, w_ih, w_hh, b, h0, c0, *, seq_len, batch):
    """One (optionally bidirectional) LSTM layer; directions on a parallel grid axis.

    x:     (P, S*B, I)   compute-dtype feature parts, rows ordered (time, batch)
    w_ih:  (D, P, I, 4H) / w_hh: (D, H, 4H) compute dtype; b: (D, 1, 4H) f32
    h0,c0: (D, B, H) f32
    Returns hseq (D, S, B, H) compute dtype, h_n / c_n (D, B, H) f32.
    """
    P, SB, I = x.shape
    D, H, H4 = w_hh.shape
    assert H4 == 4 * H and SB == seq_len * batch
    S, B = seq_len, batch

    t_chunk, fp = _pick_time_chunk(S, B, P, I, H, jnp.dtype(x.dtype).itemsize)
    nc = S // t_chunk

    unroll = 1
    for u in range(min(8, t_chunk), 0, -1):           # capped unroll (review: avoid full unroll)
        if t_chunk % u == 0:
            unroll = u
            break

    def rev(d, c):                                    # fwd: c ; rev: nc-1-c  (no jnp.flip)
        return c + d * (nc - 1 - 2 * c)

    x_map = lambda d, c: (0, rev(d, c), 0)
    w4_map = lambda d, c: (d, 0, 0, 0)
    w3_map = lambda d, c: (d, 0, 0)
    st_map = lambda d, c: (d, 0, 0)
    hseq_map = lambda d, c: (d, rev(d, c), 0, 0)

    kernel = functools.partial(_lstm_layer_kernel, unroll=unroll)
    hseq, h_n, c_n = pl.pallas_call(
        kernel,
        out_shape=(jax.ShapeDtypeStruct((D, S, B, H), x.dtype),
                   jax.ShapeDtypeStruct((D, B, H), jnp.float32),
                   jax.ShapeDtypeStruct((D, B, H), jnp.float32)),
        grid=(D, nc),
        in_specs=[pl.BlockSpec((P, t_chunk * B, I), x_map),
                  pl.BlockSpec((1, P, I, H4), w4_map),
                  pl.BlockSpec((1, H, H4), w3_map),
                  pl.BlockSpec((1, 1, H4), w3_map),
                  pl.BlockSpec((1, B, H), st_map),
                  pl.BlockSpec((1, B, H), st_map)],
        out_specs=(pl.BlockSpec((1, t_chunk, B, H), hseq_map),
                   pl.BlockSpec((1, B, H), st_map),
                   pl.BlockSpec((1, B, H), st_map)),
        scratch_shapes=[pltpu.VMEM((B, H), jnp.float32),           # h carry
                        pltpu.VMEM((B, H), jnp.float32),           # c carry
                        pltpu.VMEM((t_chunk * B, H4), jnp.float32)],  # hoisted x @ W_ih + b
        compiler_params=_compiler_params(("parallel", "arbitrary"), fp),
    )(x, w_ih, w_hh, b, h0, c0)
    return hseq, h_n, c_n


def lstm_layer_ref(x, w_ih, w_hh, b, h0, c0, *, seq_len, batch):
    """Pure-JAX reference with identical precision choices (bf16 operands, f32 accumulation)."""
    P, _, _ = x.shape
    D, H, _ = w_hh.shape
    S, B = seq_len, batch
    hseqs, hns, cns = [], [], []
    for d in range(D):
        xp = jnp.dot(x[0], w_ih[d, 0], preferred_element_type=jnp.float32)
        for p in range(1, P):
            xp = xp + jnp.dot(x[p], w_ih[d, p], preferred_element_type=jnp.float32)
        xp = (xp + b[d]).reshape(S, B, 4 * H)
        h, c = h0[d], c0[d]
        outs = [None] * S
        order = range(S) if d == 0 else range(S - 1, -1, -1)
        for t in order:
            gates = jnp.dot(h.astype(w_hh.dtype), w_hh[d],
                            preferred_element_type=jnp.float32) + xp[t]
            i_g = _sigmoid(gates[:, 0 * H:1 * H])
            f_g = _sigmoid(gates[:, 1 * H:2 * H])
            g_g = jnp.tanh(gates[:, 2 * H:3 * H])
            o_g = _sigmoid(gates[:, 3 * H:4 * H])
            c = f_g * c + i_g * g_g
            h = o_g * jnp.tanh(c)
            outs[t] = h.astype(x.dtype)
        hseqs.append(jnp.stack(outs, axis=0))
        hns.append(h)
        cns.append(c)
    return jnp.stack(hseqs, axis=0), jnp.stack(hns, axis=0), jnp.stack(cns, axis=0)


# ============================================================================= Linear kernel
def _linear_kernel(x_ref, w_ref, b_ref, o_ref, acc_ref):
    k = pl.program_id(2)

    @pl.when(k == 0)
    def _():
        acc_ref[...] = jnp.zeros_like(acc_ref)

    acc_ref[...] += jnp.dot(x_ref[...], w_ref[...], preferred_element_type=jnp.float32)

    @pl.when(k == pl.num_programs(2) - 1)
    def _():
        # Logits kept f32 for PyTorch parity; emit bf16 here if downstream tolerates it.
        o_ref[...] = (acc_ref[...] + b_ref[...]).astype(o_ref.dtype)


def _pick_tile(dim, pref, align):
    if dim <= pref:
        return dim
    t = (pref // align) * align
    while t >= align:
        if dim % t == 0:
            return t
        t -= align
    return dim   # TODO(synk): pad + mask instead of falling back to a full-dimension tile.


def linear_pallas(x, w_t, b, *, tm=256, tn=1024, tk=1024):
    """Tiled (x @ w_t + b) with f32 VMEM accumulator; tiles sized per the v6e/v7x guidance and
    clipped to full dims at small shapes."""
    N, K = x.shape
    V = w_t.shape[1]
    tm = _pick_tile(N, tm, 8)
    tn = _pick_tile(V, tn, 128)
    tk = _pick_tile(K, tk, 128)
    dbytes = jnp.dtype(x.dtype).itemsize
    fp = 2 * (tm * tk + tk * tn) * dbytes + 2 * tm * tn * 4 + tn * 4
    return pl.pallas_call(
        _linear_kernel,
        out_shape=jax.ShapeDtypeStruct((N, V), jnp.float32),
        grid=(N // tm, V // tn, K // tk),
        in_specs=[pl.BlockSpec((tm, tk), lambda i, j, k: (i, k)),
                  pl.BlockSpec((tk, tn), lambda i, j, k: (k, j)),
                  pl.BlockSpec((1, tn), lambda i, j, k: (0, j))],
        out_specs=pl.BlockSpec((tm, tn), lambda i, j, k: (i, j)),
        scratch_shapes=[pltpu.VMEM((tm, tn), jnp.float32)],
        compiler_params=_compiler_params(("parallel", "parallel", "arbitrary"), fp),
    )(x, w_t, b.reshape(1, V))


def linear_ref(x, w_t, b):
    return jnp.dot(x, w_t, preferred_element_type=jnp.float32) + b.reshape(1, -1)


# ============================================================================= Forward (glue)
def _forward(params, x, layer_fn, linear_fn, hidden=None):
    B, S = x.shape
    cd = params["compute_dtype"]
    L = params["num_layers"]
    D = params["directions"]
    H = params["hidden_per_dir"]

    # Embedding gather directly into (time, batch)-major row order: no activation transpose.
    # TODO(synk): the embedding gather itself stays in XLA (a Pallas DMA-gather buys nothing).
    tokens = x.T.reshape(-1)                                        # (S*B,)
    emb = jnp.take(params["embedding"], tokens, axis=0).astype(cd)  # (S*B, E)
    layer_in = emb[None]                                            # (1, S*B, E): one feature part

    if hidden is None:
        h0 = jnp.zeros((L * D, B, H), jnp.float32)
        c0 = jnp.zeros_like(h0)
    else:
        h0, c0 = hidden

    hn_list, cn_list = [], []
    hseq = None
    for layer in range(L):
        w_ih, w_hh, b = params["lstm"][layer]
        hseq, hn, cn = layer_fn(layer_in, w_ih, w_hh, b,
                                h0[layer * D:(layer + 1) * D],
                                c0[layer * D:(layer + 1) * D],
                                seq_len=S, batch=B)
        hn_list.append(hn)
        cn_list.append(cn)
        # Next layer consumes the D direction outputs as separate feature parts (partial-matmul
        # sum inside the hoisted projection) -> no jnp.concatenate HBM pass, only a free reshape.
        layer_in = hseq.reshape(D, S * B, H)

    # Reorder the SMALL hidden activation (not the big logits) to PyTorch's
    # out.transpose(0,1).reshape(S*B, -1) row order; this also realizes the fwd/rev feature
    # concat in one fused XLA op.
    # TODO(synk): this last small-activation round trip could be folded into the linear's input
    # BlockSpec index_map, but is kept in XLA for robustness.
    lin_in = jnp.transpose(hseq, (2, 1, 0, 3)).reshape(B * S, D * H)
    w_lin, b_lin = params["linear"]
    out = linear_fn(lin_in, w_lin, b_lin)                           # (B*S, V) f32, (b, s) rows

    h_n = jnp.concatenate(hn_list, axis=0)                          # (num_layers*D, B, H)
    c_n = jnp.concatenate(cn_list, axis=0)
    return out, (h_n, c_n)


def rnn_forward(params, x, hidden=None):
    return _forward(params, x, lstm_layer_pallas, linear_pallas, hidden)


def rnn_forward_ref(params, x, hidden=None):
    return _forward(params, x, lstm_layer_ref, linear_ref, hidden)


# ============================================================================= Param init
def init_params(key, vocab_size, embedding_dim, hidden_dim, num_layers, bidirectional,
                compute_dtype=COMPUTE_DTYPE):
    directions = 2 if bidirectional else 1
    H = hidden_dim // directions
    keys = iter(jax.random.split(key, 1 + 4 * num_layers * directions + 2))

    params = {"num_layers": num_layers, "directions": directions,
              "hidden_per_dir": H, "compute_dtype": compute_dtype}
    params["embedding"] = jax.random.normal(next(keys), (vocab_size, embedding_dim), jnp.float32)

    k = 1.0 / np.sqrt(H)
    lstm = []
    for layer in range(num_layers):
        n_parts = 1 if layer == 0 else directions
        in_dim = embedding_dim if layer == 0 else H
        w_ih_dirs, w_hh_dirs, b_dirs = [], [], []
        for _ in range(directions):
            w_ih = jax.random.uniform(next(keys), (4 * H, n_parts * in_dim), jnp.float32, -k, k)
            w_hh = jax.random.uniform(next(keys), (4 * H, H), jnp.float32, -k, k)
            b_ih = jax.random.uniform(next(keys), (4 * H,), jnp.float32, -k, k)
            b_hh = jax.random.uniform(next(keys), (4 * H,), jnp.float32, -k, k)
            # (4H, P*I) -> (P, I, 4H): per-part transposed input weights (part p multiplies the
            # p-th direction of the previous layer's output, or the embedding for layer 0).
            w_ih_dirs.append(
                jnp.transpose(w_ih.reshape(4 * H, n_parts, in_dim), (1, 2, 0)).astype(compute_dtype))
            w_hh_dirs.append(w_hh.T.astype(compute_dtype))
            b_dirs.append((b_ih + b_hh).reshape(1, 4 * H))
        lstm.append((jnp.stack(w_ih_dirs, axis=0),      # (D, P, I, 4H)
                     jnp.stack(w_hh_dirs, axis=0),      # (D, H, 4H)
                     jnp.stack(b_dirs, axis=0)))        # (D, 1, 4H) f32
    params["lstm"] = lstm

    kl = 1.0 / np.sqrt(hidden_dim)
    w_lin = jax.random.uniform(next(keys), (vocab_size, hidden_dim), jnp.float32, -kl, kl)
    b_lin = jax.random.uniform(next(keys), (vocab_size,), jnp.float32, -kl, kl)
    params["linear"] = (w_lin.T.astype(compute_dtype), b_lin)
    return params


# ============================================================================= Main
if __name__ == "__main__":
    vocab_size, embedding_dim, hidden_dim = 64, 32, 32
    num_layers, bidirectional = 2, True
    B, S = 2, 8

    root = jax.random.PRNGKey(0)
    pkey, xkey = jax.random.split(root)
    params = init_params(pkey, vocab_size, embedding_dim, hidden_dim,
                         num_layers, bidirectional)
    x = jax.random.randint(xkey, (B, S), 0, vocab_size, dtype=jnp.int32)

    out, (h_n, c_n) = jax.block_until_ready(rnn_forward(params, x))

    # shape sanity (PyTorch semantics)
    directions = 2 if bidirectional else 1
    assert out.shape == (S * B, vocab_size)
    assert h_n.shape == (num_layers * directions, B, hidden_dim // directions)
    assert c_n.shape == (num_layers * directions, B, hidden_dim // directions)

    # numerical check against a pure-JAX reference using identical precision choices
    ref_out, (ref_h, ref_c) = rnn_forward_ref(params, x)
    np.testing.assert_allclose(np.asarray(out), np.asarray(ref_out), rtol=2e-2, atol=2e-2)
    np.testing.assert_allclose(np.asarray(h_n), np.asarray(ref_h), rtol=2e-2, atol=2e-2)
    np.testing.assert_allclose(np.asarray(c_n), np.asarray(ref_c), rtol=2e-2, atol=2e-2)

    print("KERNEL_OK")
</pallas_src>

<mosaic_0001>
module attributes {stable_mosaic.version = 11 : i64} {
  func.func @_lstm_layer_kernel(%arg0: i32, %arg1: i32, %arg2: memref<1x16x32xbf16, #tpu.memory_space<vmem>>, %arg3: memref<1x1x32x64xbf16, #tpu.memory_space<vmem>>, %arg4: memref<1x16x64xbf16, #tpu.memory_space<vmem>>, %arg5: memref<1x1x64xf32, #tpu.memory_space<vmem>>, %arg6: memref<1x2x16xf32, #tpu.memory_space<vmem>>, %arg7: memref<1x2x16xf32, #tpu.memory_space<vmem>>, %arg8: memref<1x8x2x16xbf16, #tpu.memory_space<vmem>>, %arg9: memref<1x2x16xf32, #tpu.memory_space<vmem>>, %arg10: memref<1x2x16xf32, #tpu.memory_space<vmem>>, %arg11: memref<2x16xf32, #tpu.memory_space<vmem>>, %arg12: memref<2x16xf32, #tpu.memory_space<vmem>>, %arg13: memref<16x64xf32, #tpu.memory_space<vmem>>) attributes {dimension_semantics = [#tpu.dimension_semantics<parallel>, #tpu.dimension_semantics<arbitrary>], iteration_bounds = array<i64: 2, 1>, scalar_prefetch = 0 : i64, scratch_operands = 3 : i64, tpu.core_type = #tpu.core_type<tc>, window_params = [{transform_indices = @transform_0, window_bounds = array<i64: 1, 16, 32>}, {transform_indices = @transform_1, window_bounds = array<i64: 1, 1, 32, 64>}, {transform_indices = @transform_2, window_bounds = array<i64: 1, 16, 64>}, {transform_indices = @transform_3, window_bounds = array<i64: 1, 1, 64>}, {transform_indices = @transform_4, window_bounds = array<i64: 1, 2, 16>}, {transform_indices = @transform_5, window_bounds = array<i64: 1, 2, 16>}, {transform_indices = @transform_6, window_bounds = array<i64: 1, 8, 2, 16>}, {transform_indices = @transform_7, window_bounds = array<i64: 1, 2, 16>}, {transform_indices = @transform_8, window_bounds = array<i64: 1, 2, 16>}]} {
    %c0_i32 = arith.constant 0 : i32
    %0 = arith.cmpi eq, %arg1, %c0_i32 : i32
    %1 = arith.extui %0 : i1 to i32
    %c0_i32_0 = arith.constant 0 : i32
    %2 = arith.cmpi ne, %1, %c0_i32_0 : i32
    scf.if %2 {
      %c0_162 = arith.constant 0 : index
      %c0_163 = arith.constant 0 : index
      %c0_164 = arith.constant 0 : index
      %398 = vector.load %arg6[%c0_162, %c0_163, %c0_164] : memref<1x2x16xf32, #tpu.memory_space<vmem>>, vector<1x2x16xf32>
      %399 = vector.shape_cast %398 : vector<1x2x16xf32> to vector<2x16xf32>
      %c0_165 = arith.constant 0 : index
      %c0_166 = arith.constant 0 : index
      %400 = vector.load %arg11[%c0_165, %c0_166] : memref<2x16xf32, #tpu.memory_space<vmem>>, vector<2x16xf32>
      tpu.vector_store %arg11[%c0_165, %c0_166], %399 {strides = array<i32>} : memref<2x16xf32, #tpu.memory_space<vmem>>, vector<2x16xf32>,
      %c0_167 = arith.constant 0 : index
      %c0_168 = arith.constant 0 : index
      %c0_169 = arith.constant 0 : index
      %401 = vector.load %arg7[%c0_167, %c0_168, %c0_169] : memref<1x2x16xf32, #tpu.memory_space<vmem>>, vector<1x2x16xf32>
      %402 = vector.shape_cast %401 : vector<1x2x16xf32> to vector<2x16xf32>
      %c0_170 = arith.constant 0 : index
      %c0_171 = arith.constant 0 : index
      %403 = vector.load %arg12[%c0_170, %c0_171] : memref<2x16xf32, #tpu.memory_space<vmem>>, vector<2x16xf32>
      tpu.vector_store %arg12[%c0_170, %c0_171], %402 {strides = array<i32>} : memref<2x16xf32, #tpu.memory_space<vmem>>, vector<2x16xf32>,
    } else {
    }
    %c0 = arith.constant 0 : index
    %c0_1 = arith.constant 0 : index
    %c0_2 = arith.constant 0 : index
    %3 = vector.load %arg2[%c0, %c0_1, %c0_2] : memref<1x16x32xbf16, #tpu.memory_space<vmem>>, vector<1x16x32xbf16>
    %4 = vector.shape_cast %3 : vector<1x16x32xbf16> to vector<16x32xbf16>
    %c0_3 = arith.constant 0 : index
    %c0_4 = arith.constant 0 : index
    %c0_5 = arith.constant 0 : index
    %c0_6 = arith.constant 0 : index
    %5 = vector.load %arg3[%c0_3, %c0_4, %c0_5, %c0_6] : memref<1x1x32x64xbf16, #tpu.memory_space<vmem>>, vector<1x1x32x64xbf16>
    %6 = vector.shape_cast %5 : vector<1x1x32x64xbf16> to vector<32x64xbf16>
    %cst = arith.constant dense<0.000000e+00> : vector<16x64xf32>
    %7 = tpu.matmul %4, %6, %cst {dimension_numbers = #tpu.dot_dimension_numbers<[1], [0], [0], [1], [0, 0, 1, 1], [], []>} : vector<16x32xbf16>, vector<32x64xbf16>, vector<16x64xf32> -> vector<16x64xf32>
    %c0_7 = arith.constant 0 : index
    %c0_8 = arith.constant 0 : index
    %c0_9 = arith.constant 0 : index
    %8 = vector.load %arg5[%c0_7, %c0_8, %c0_9] : memref<1x1x64xf32, #tpu.memory_space<vmem>>, vector<1x1x64xf32>
    %9 = vector.shape_cast %8 : vector<1x1x64xf32> to vector<1x64xf32>
    %10 = vector.broadcast %9 : vector<1x64xf32> to vector<16x64xf32>
    %11 = arith.addf %7, %10 : vector<16x64xf32>
    %c0_10 = arith.constant 0 : index
    %c0_11 = arith.constant 0 : index
    %12 = vector.load %arg13[%c0_10, %c0_11] : memref<16x64xf32, #tpu.memory_space<vmem>>, vector<16x64xf32>
    tpu.vector_store %arg13[%c0_10, %c0_11], %11 {strides = array<i32>} : memref<16x64xf32, #tpu.memory_space<vmem>>, vector<16x64xf32>,
    %c0_12 = arith.constant 0 : index
    %c0_13 = arith.constant 0 : index
    %c0_14 = arith.constant 0 : index
    %13 = vector.load %arg4[%c0_12, %c0_13, %c0_14] : memref<1x16x64xbf16, #tpu.memory_space<vmem>>, vector<1x16x64xbf16>
    %14 = vector.shape_cast %13 : vector<1x16x64xbf16> to vector<16x64xbf16>
    %c0_15 = arith.constant 0 : index
    %c0_16 = arith.constant 0 : index
    %15 = vector.load %arg11[%c0_15, %c0_16] : memref<2x16xf32, #tpu.memory_space<vmem>>, vector<2x16xf32>
    %c0_17 = arith.constant 0 : index
    %c0_18 = arith.constant 0 : index
    %16 = vector.load %arg12[%c0_17, %c0_18] : memref<2x16xf32, #tpu.memory_space<vmem>>, vector<2x16xf32>
    %c0_i32_19 = arith.constant 0 : i32
    %c2_i32 = arith.constant 2 : i32
    %17 = arith.muli %c2_i32, %c0_i32_19 : i32
    %c7_i32 = arith.constant 7 : i32
    %18 = arith.subi %c7_i32, %17 : i32
    %19 = arith.muli %arg0, %18 : i32
    %20 = arith.addi %c0_i32_19, %19 : i32
    %c2_i32_20 = arith.constant 2 : i32
    %21 = arith.muli %20, %c2_i32_20 : i32
    %22 = tpu.assume_multiple %21, 2 : i32
    %23 = arith.truncf %15 : vector<2x16xf32> to vector<2x16xbf16>
    %cst_21 = arith.constant dense<0.000000e+00> : vector<2x64xf32>
    %24 = tpu.matmul %23, %14, %cst_21 {dimension_numbers = #tpu.dot_dimension_numbers<[1], [0], [0], [1], [0, 0, 1, 1], [], []>} : vector<2x16xbf16>, vector<16x64xbf16>, vector<2x64xf32> -> vector<2x64xf32>
    %25 = arith.index_cast %22 : i32 to index
    %c0_22 = arith.constant 0 : index
    %26 = vector.load %arg13[%25, %c0_22] : memref<16x64xf32, #tpu.memory_space<vmem>>, vector<2x64xf32>
    %27 = arith.addf %24, %26 : vector<2x64xf32>
    %28 = vector.extract_strided_slice %27 {offsets = [0, 0], sizes = [2, 16], strides = [1, 1]} : vector<2x64xf32> to vector<2x16xf32>
    %cst_23 = arith.constant 0.000000e+00 : f32
    %29 = vector.broadcast %cst_23 : f32 to vector<2x16xf32>
    %30 = arith.subf %29, %28 : vector<2x16xf32>
    %31 = math.exp %30 : vector<2x16xf32>
    %cst_24 = arith.constant 1.000000e+00 : f32
    %32 = vector.broadcast %cst_24 : f32 to vector<2x16xf32>
    %33 = arith.addf %32, %31 : vector<2x16xf32>
    %cst_25 = arith.constant 1.000000e+00 : f32
    %34 = vector.broadcast %cst_25 : f32 to vector<2x16xf32>
    %35 = arith.divf %34, %33 : vector<2x16xf32>
    %36 = vector.extract_strided_slice %27 {offsets = [0, 16], sizes = [2, 16], strides = [1, 1]} : vector<2x64xf32> to vector<2x16xf32>
    %cst_26 = arith.constant 0.000000e+00 : f32
    %37 = vector.broadcast %cst_26 : f32 to vector<2x16xf32>
    %38 = arith.subf %37, %36 : vector<2x16xf32>
    %39 = math.exp %38 : vector<2x16xf32>
    %cst_27 = arith.constant 1.000000e+00 : f32
    %40 = vector.broadcast %cst_27 : f32 to vector<2x16xf32>
    %41 = arith.addf %40, %39 : vector<2x16xf32>
    %cst_28 = arith.constant 1.000000e+00 : f32
    %42 = vector.broadcast %cst_28 : f32 to vector<2x16xf32>
    %43 = arith.divf %42, %41 : vector<2x16xf32>
    %44 = vector.extract_strided_slice %27 {offsets = [0, 32], sizes = [2, 16], strides = [1, 1]} : vector<2x64xf32> to vector<2x16xf32>
    %45 = math.tanh %44 : vector<2x16xf32>
    %46 = vector.extract_strided_slice %27 {offsets = [0, 48], sizes = [2, 16], strides = [1, 1]} : vector<2x64xf32> to vector<2x16xf32>
    %cst_29 = arith.constant 0.000000e+00 : f32
    %47 = vector.broadcast %cst_29 : f32 to vector<2x16xf32>
    %48 = arith.subf %47, %46 : vector<2x16xf32>
    %49 = math.exp %48 : vector<2x16xf32>
    %cst_30 = arith.constant 1.000000e+00 : f32
    %50 = vector.broadcast %cst_30 : f32 to vector<2x16xf32>
    %51 = arith.addf %50, %49 : vector<2x16xf32>
    %cst_31 = arith.constant 1.000000e+00 : f32
    %52 = vector.broadcast %cst_31 : f32 to vector<2x16xf32>
    %53 = arith.divf %52, %51 : vector<2x16xf32>
    %54 = arith.mulf %43, %16 : vector<2x16xf32>
    %55 = arith.mulf %35, %45 : vector<2x16xf32>
    %56 = arith.addf %54, %55 : vector<2x16xf32>
    %57 = math.tanh %56 : vector<2x16xf32>
    %58 = arith.mulf %53, %57 : vector<2x16xf32>
    %59 = arith.truncf %58 : vector<2x16xf32> to vector<2x16xbf16>
    %c0_32 = arith.constant 0 : index
    %60 = arith.index_cast %20 : i32 to index
    %c0_33 = arith.constant 0 : index
    %c0_34 = arith.constant 0 : index
    %61 = vector.load %arg8[%c0_32, %60, %c0_33, %c0_34] : memref<1x8x2x16xbf16, #tpu.memory_space<vmem>>, vector<1x1x2x16xbf16>
    %62 = vector.shape_cast %61 : vector<1x1x2x16xbf16> to vector<2x16xbf16>
    %63 = vector.shape_cast %59 : vector<2x16xbf16> to vector<1x1x2x16xbf16>
    tpu.vector_store %arg8[%c0_32, %60, %c0_33, %c0_34], %63 {strides = array<i32>} : memref<1x8x2x16xbf16, #tpu.memory_space<vmem>>, vector<1x1x2x16xbf16>,
    %c1_i32 = arith.constant 1 : i32
    %c2_i32_35 = arith.constant 2 : i32
    %64 = arith.muli %c2_i32_35, %c1_i32 : i32
    %c7_i32_36 = arith.constant 7 : i32
    %65 = arith.subi %c7_i32_36, %64 : i32
    %66 = arith.muli %arg0, %65 : i32
    %67 = arith.addi %c1_i32, %66 : i32
    %c2_i32_37 = arith.constant 2 : i32
    %68 = arith.muli %67, %c2_i32_37 : i32
    %69 = tpu.assume_multiple %68, 2 : i32
    %70 = arith.truncf %58 : vector<2x16xf32> to vector<2x16xbf16>
    %cst_38 = arith.constant dense<0.000000e+00> : vector<2x64xf32>
    %71 = tpu.matmul %70, %14, %cst_38 {dimension_numbers = #tpu.dot_dimension_numbers<[1], [0], [0], [1], [0, 0, 1, 1], [], []>} : vector<2x16xbf16>, vector<16x64xbf16>, vector<2x64xf32> -> vector<2x64xf32>
    %72 = arith.index_cast %69 : i32 to index
    %c0_39 = arith.constant 0 : index
    %73 = vector.load %arg13[%72, %c0_39] : memref<16x64xf32, #tpu.memory_space<vmem>>, vector<2x64xf32>
    %74 = arith.addf %71, %73 : vector<2x64xf32>
    %75 = vector.extract_strided_slice %74 {offsets = [0, 0], sizes = [2, 16], strides = [1, 1]} : vector<2x64xf32> to vector<2x16xf32>
    %cst_40 = arith.constant 0.000000e+00 : f32
    %76 = vector.broadcast %cst_40 : f32 to vector<2x16xf32>
    %77 = arith.subf %76, %75 : vector<2x16xf32>
    %78 = math.exp %77 : vector<2x16xf32>
    %cst_41 = arith.constant 1.000000e+00 : f32
    %79 = vector.broadcast %cst_41 : f32 to vector<2x16xf32>
    %80 = arith.addf %79, %78 : vector<2x16xf32>
    %cst_42 = arith.constant 1.000000e+00 : f32
    %81 = vector.broadcast %cst_42 : f32 to vector<2x16xf32>
    %82 = arith.divf %81, %80 : vector<2x16xf32>
    %83 = vector.extract_strided_slice %74 {offsets = [0, 16], sizes = [2, 16], strides = [1, 1]} : vector<2x64xf32> to vector<2x16xf32>
    %cst_43 = arith.constant 0.000000e+00 : f32
    %84 = vector.broadcast %cst_43 : f32 to vector<2x16xf32>
    %85 = arith.subf %84, %83 : vector<2x16xf32>
    %86 = math.exp %85 : vector<2x16xf32>
    %cst_44 = arith.constant 1.000000e+00 : f32
    %87 = vector.broadcast %cst_44 : f32 to vector<2x16xf32>
    %88 = arith.addf %87, %86 : vector<2x16xf32>
    %cst_45 = arith.constant 1.000000e+00 : f32
    %89 = vector.broadcast %cst_45 : f32 to vector<2x16xf32>
    %90 = arith.divf %89, %88 : vector<2x16xf32>
    %91 = vector.extract_strided_slice %74 {offsets = [0, 32], sizes = [2, 16], strides = [1, 1]} : vector<2x64xf32> to vector<2x16xf32>
    %92 = math.tanh %91 : vector<2x16xf32>
    %93 = vector.extract_strided_slice %74 {offsets = [0, 48], sizes = [2, 16], strides = [1, 1]} : vector<2x64xf32> to vector<2x16xf32>
    %cst_46 = arith.constant 0.000000e+00 : f32
    %94 = vector.broadcast %cst_46 : f32 to vector<2x16xf32>
    %95 = arith.subf %94, %93 : vector<2x16xf32>
    %96 = math.exp %95 : vector<2x16xf32>
    %cst_47 = arith.constant 1.000000e+00 : f32
    %97 = vector.broadcast %cst_47 : f32 to vector<2x16xf32>
    %98 = arith.addf %97, %96 : vector<2x16xf32>
    %cst_48 = arith.constant 1.000000e+00 : f32
    %99 = vector.broadcast %cst_48 : f32 to vector<2x16xf32>
    %100 = arith.divf %99, %98 : vector<2x16xf32>
    %101 = arith.mulf %90, %56 : vector<2x16xf32>
    %102 = arith.mulf %82, %92 : vector<2x16xf32>
    %103 = arith.addf %101, %102 : vector<2x16xf32>
    %104 = math.tanh %103 : vector<2x16xf32>
    %105 = arith.mulf %100, %104 : vector<2x16xf32>
    %106 = arith.truncf %105 : vector<2x16xf32> to vector<2x16xbf16>
    %c0_49 = arith.constant 0 : index
    %107 = arith.index_cast %67 : i32 to index
    %c0_50 = arith.constant 0 : index
    %c0_51 = arith.constant 0 : index
    %108 = vector.load %arg8[%c0_49, %107, %c0_50, %c0_51] : memref<1x8x2x16xbf16, #tpu.memory_space<vmem>>, vector<1x1x2x16xbf16>
    %109 = vector.shape_cast %108 : vector<1x1x2x16xbf16> to vector<2x16xbf16>
    %110 = vector.shape_cast %106 : vector<2x16xbf16> to vector<1x1x2x16xbf16>
    tpu.vector_store %arg8[%c0_49, %107, %c0_50, %c0_51], %110 {strides = array<i32>} : memref<1x8x2x16xbf16, #tpu.memory_space<vmem>>, vector<1x1x2x16xbf16>,
    %c2_i32_52 = arith.constant 2 : i32
    %c2_i32_53 = arith.constant 2 : i32
    %111 = arith.muli %c2_i32_53, %c2_i32_52 : i32
    %c7_i32_54 = arith.constant 7 : i32
    %112 = arith.subi %c7_i32_54, %111 : i32
    %113 = arith.muli %arg0, %112 : i32
    %114 = arith.addi %c2_i32_52, %113 : i32
    %c2_i32_55 = arith.constant 2 : i32
    %115 = arith.muli %114, %c2_i32_55 : i32
    %116 = tpu.assume_multiple %115, 2 : i32
    %117 = arith.truncf %105 : vector<2x16xf32> to vector<2x16xbf16>
    %cst_56 = arith.constant dense<0.000000e+00> : vector<2x64xf32>
    %118 = tpu.matmul %117, %14, %cst_56 {dimension_numbers = #tpu.dot_dimension_numbers<[1], [0], [0], [1], [0, 0, 1, 1], [], []>} : vector<2x16xbf16>, vector<16x64xbf16>, vector<2x64xf32> -> vector<2x64xf32>
    %119 = arith.index_cast %116 : i32 to index
    %c0_57 = arith.constant 0 : index
    %120 = vector.load %arg13[%119, %c0_57] : memref<16x64xf32, #tpu.memory_space<vmem>>, vector<2x64xf32>
    %121 = arith.addf %118, %120 : vector<2x64xf32>
    %122 = vector.extract_strided_slice %121 {offsets = [0, 0], sizes = [2, 16], strides = [1, 1]} : vector<2x64xf32> to vector<2x16xf32>
    %cst_58 = arith.constant 0.000000e+00 : f32
    %123 = vector.broadcast %cst_58 : f32 to vector<2x16xf32>
    %124 = arith.subf %123, %122 : vector<2x16xf32>
    %125 = math.exp %124 : vector<2x16xf32>
    %cst_59 = arith.constant 1.000000e+00 : f32
    %126 = vector.broadcast %cst_59 : f32 to vector<2x16xf32>
    %127 = arith.addf %126, %125 : vector<2x16xf32>
    %cst_60 = arith.constant 1.000000e+00 : f32
    %128 = vector.broadcast %cst_60 : f32 to vector<2x16xf32>
    %129 = arith.divf %128, %127 : vector<2x16xf32>
    %130 = vector.extract_strided_slice %121 {offsets = [0, 16], sizes = [2, 16], strides = [1, 1]} : vector<2x64xf32> to vector<2x16xf32>
    %cst_61 = arith.constant 0.000000e+00 : f32
    %131 = vector.broadcast %cst_61 : f32 to vector<2x16xf32>
    %132 = arith.subf %131, %130 : vector<2x16xf32>
    %133 = math.exp %132 : vector<2x16xf32>
    %cst_62 = arith.constant 1.000000e+00 : f32
    %134 = vector.broadcast %cst_62 : f32 to vector<2x16xf32>
    %135 = arith.addf %134, %133 : vector<2x16xf32>
    %cst_63 = arith.constant 1.000000e+00 : f32
    %136 = vector.broadcast %cst_63 : f32 to vector<2x16xf32>
    %137 = arith.divf %136, %135 : vector<2x16xf32>
    %138 = vector.extract_strided_slice %121 {offsets = [0, 32], sizes = [2, 16], strides = [1, 1]} : vector<2x64xf32> to vector<2x16xf32>
    %139 = math.tanh %138 : vector<2x16xf32>
    %140 = vector.extract_strided_slice %121 {offsets = [0, 48], sizes = [2, 16], strides = [1, 1]} : vector<2x64xf32> to vector<2x16xf32>
    %cst_64 = arith.constant 0.000000e+00 : f32
    %141 = vector.broadcast %cst_64 : f32 to vector<2x16xf32>
    %142 = arith.subf %141, %140 : vector<2x16xf32>
    %143 = math.exp %142 : vector<2x16xf32>
    %cst_65 = arith.constant 1.000000e+00 : f32
    %144 = vector.broadcast %cst_65 : f32 to vector<2x16xf32>
    %145 = arith.addf %144, %143 : vector<2x16xf32>
    %cst_66 = arith.constant 1.000000e+00 : f32
    %146 = vector.broadcast %cst_66 : f32 to vector<2x16xf32>
    %147 = arith.divf %146, %145 : vector<2x16xf32>
    %148 = arith.mulf %137, %103 : vector<2x16xf32>
    %149 = arith.mulf %129, %139 : vector<2x16xf32>
    %150 = arith.addf %148, %149 : vector<2x16xf32>
    %151 = math.tanh %150 : vector<2x16xf32>
    %152 = arith.mulf %147, %151 : vector<2x16xf32>
    %153 = arith.truncf %152 : vector<2x16xf32> to vector<2x16xbf16>
    %c0_67 = arith.constant 0 : index
    %154 = arith.index_cast %114 : i32 to index
    %c0_68 = arith.constant 0 : index
    %c0_69 = arith.constant 0 : index
    %155 = vector.load %arg8[%c0_67, %154, %c0_68, %c0_69] : memref<1x8x2x16xbf16, #tpu.memory_space<vmem>>, vector<1x1x2x16xbf16>
    %156 = vector.shape_cast %155 : vector<1x1x2x16xbf16> to vector<2x16xbf16>
    %157 = vector.shape_cast %153 : vector<2x16xbf16> to vector<1x1x2x16xbf16>
    tpu.vector_store %arg8[%c0_67, %154, %c0_68, %c0_69], %157 {strides = array<i32>} : memref<1x8x2x16xbf16, #tpu.memory_space<vmem>>, vector<1x1x2x16xbf16>,
    %c3_i32 = arith.constant 3 : i32
    %c2_i32_70 = arith.constant 2 : i32
    %158 = arith.muli %c2_i32_70, %c3_i32 : i32
    %c7_i32_71 = arith.constant 7 : i32
    %159 = arith.subi %c7_i32_71, %158 : i32
    %160 = arith.muli %arg0, %159 : i32
    %161 = arith.addi %c3_i32, %160 : i32
    %c2_i32_72 = arith.constant 2 : i32
    %162 = arith.muli %161, %c2_i32_72 : i32
    %163 = tpu.assume_multiple %162, 2 : i32
    %164 = arith.truncf %152 : vector<2x16xf32> to vector<2x16xbf16>
    %cst_73 = arith.constant dense<0.000000e+00> : vector<2x64xf32>
    %165 = tpu.matmul %164, %14, %cst_73 {dimension_numbers = #tpu.dot_dimension_numbers<[1], [0], [0], [1], [0, 0, 1, 1], [], []>} : vector<2x16xbf16>, vector<16x64xbf16>, vector<2x64xf32> -> vector<2x64xf32>
    %166 = arith.index_cast %163 : i32 to index
    %c0_74 = arith.constant 0 : index
    %167 = vector.load %arg13[%166, %c0_74] : memref<16x64xf32, #tpu.memory_space<vmem>>, vector<2x64xf32>
    %168 = arith.addf %165, %167 : vector<2x64xf32>
    %169 = vector.extract_strided_slice %168 {offsets = [0, 0], sizes = [2, 16], strides = [1, 1]} : vector<2x64xf32> to vector<2x16xf32>
    %cst_75 = arith.constant 0.000000e+00 : f32
    %170 = vector.broadcast %cst_75 : f32 to vector<2x16xf32>
    %171 = arith.subf %170, %169 : vector<2x16xf32>
    %172 = math.exp %171 : vector<2x16xf32>
    %cst_76 = arith.constant 1.000000e+00 : f32
    %173 = vector.broadcast %cst_76 : f32 to vector<2x16xf32>
    %174 = arith.addf %173, %172 : vector<2x16xf32>
    %cst_77 = arith.constant 1.000000e+00 : f32
    %175 = vector.broadcast %cst_77 : f32 to vector<2x16xf32>
    %176 = arith.divf %175, %174 : vector<2x16xf32>
    %177 = vector.extract_strided_slice %168 {offsets = [0, 16], sizes = [2, 16], strides = [1, 1]} : vector<2x64xf32> to vector<2x16xf32>
    %cst_78 = arith.constant 0.000000e+00 : f32
    %178 = vector.broadcast %cst_78 : f32 to vector<2x16xf32>
    %179 = arith.subf %178, %177 : vector<2x16xf32>
    %180 = math.exp %179 : vector<2x16xf32>
    %cst_79 = arith.constant 1.000000e+00 : f32
    %181 = vector.broadcast %cst_79 : f32 to vector<2x16xf32>
    %182 = arith.addf %181, %180 : vector<2x16xf32>
    %cst_80 = arith.constant 1.000000e+00 : f32
    %183 = vector.broadcast %cst_80 : f32 to vector<2x16xf32>
    %184 = arith.divf %183, %182 : vector<2x16xf32>
    %185 = vector.extract_strided_slice %168 {offsets = [0, 32], sizes = [2, 16], strides = [1, 1]} : vector<2x64xf32> to vector<2x16xf32>
    %186 = math.tanh %185 : vector<2x16xf32>
    %187 = vector.extract_strided_slice %168 {offsets = [0, 48], sizes = [2, 16], strides = [1, 1]} : vector<2x64xf32> to vector<2x16xf32>
    %cst_81 = arith.constant 0.000000e+00 : f32
    %188 = vector.broadcast %cst_81 : f32 to vector<2x16xf32>
    %189 = arith.subf %188, %187 : vector<2x16xf32>
    %190 = math.exp %189 : vector<2x16xf32>
    %cst_82 = arith.constant 1.000000e+00 : f32
    %191 = vector.broadcast %cst_82 : f32 to vector<2x16xf32>
    %192 = arith.addf %191, %190 : vector<2x16xf32>
    %cst_83 = arith.constant 1.000000e+00 : f32
    %193 = vector.broadcast %cst_83 : f32 to vector<2x16xf32>
    %194 = arith.divf %193, %192 : vector<2x16xf32>
    %195 = arith.mulf %184, %150 : vector<2x16xf32>
    %196 = arith.mulf %176, %186 : vector<2x16xf32>
    %197 = arith.addf %195, %196 : vector<2x16xf32>
    %198 = math.tanh %197 : vector<2x16xf32>
    %199 = arith.mulf %194, %198 : vector<2x16xf32>
    %200 = arith.truncf %199 : vector<2x16xf32> to vector<2x16xbf16>
    %c0_84 = arith.constant 0 : index
    %201 = arith.index_cast %161 : i32 to index
    %c0_85 = arith.constant 0 : index
    %c0_86 = arith.constant 0 : index
    %202 = vector.load %arg8[%c0_84, %201, %c0_85, %c0_86] : memref<1x8x2x16xbf16, #tpu.memory_space<vmem>>, vector<1x1x2x16xbf16>
    %203 = vector.shape_cast %202 : vector<1x1x2x16xbf16> to vector<2x16xbf16>
    %204 = vector.shape_cast %200 : vector<2x16xbf16> to vector<1x1x2x16xbf16>
    tpu.vector_store %arg8[%c0_84, %201, %c0_85, %c0_86], %204 {strides = array<i32>} : memref<1x8x2x16xbf16, #tpu.memory_space<vmem>>, vector<1x1x2x16xbf16>,
    %c4_i32 = arith.constant 4 : i32
    %c2_i32_87 = arith.constant 2 : i32
    %205 = arith.muli %c2_i32_87, %c4_i32 : i32
    %c7_i32_88 = arith.constant 7 : i32
    %206 = arith.subi %c7_i32_88, %205 : i32
    %207 = arith.muli %arg0, %206 : i32
    %208 = arith.addi %c4_i32, %207 : i32
    %c2_i32_89 = arith.constant 2 : i32
    %209 = arith.muli %208, %c2_i32_89 : i32
    %210 = tpu.assume_multiple %209, 2 : i32
    %211 = arith.truncf %199 : vector<2x16xf32> to vector<2x16xbf16>
    %cst_90 = arith.constant dense<0.000000e+00> : vector<2x64xf32>
    %212 = tpu.matmul %211, %14, %cst_90 {dimension_numbers = #tpu.dot_dimension_numbers<[1], [0], [0], [1], [0, 0, 1, 1], [], []>} : vector<2x16xbf16>, vector<16x64xbf16>, vector<2x64xf32> -> vector<2x64xf32>
    %213 = arith.index_cast %210 : i32 to index
    %c0_91 = arith.constant 0 : index
    %214 = vector.load %arg13[%213, %c0_91] : memref<16x64xf32, #tpu.memory_space<vmem>>, vector<2x64xf32>
    %215 = arith.addf %212, %214 : vector<2x64xf32>
    %216 = vector.extract_strided_slice %215 {offsets = [0, 0], sizes = [2, 16], strides = [1, 1]} : vector<2x64xf32> to vector<2x16xf32>
    %cst_92 = arith.constant 0.000000e+00 : f32
    %217 = vector.broadcast %cst_92 : f32 to vector<2x16xf32>
    %218 = arith.subf %217, %216 : vector<2x16xf32>
    %219 = math.exp %218 : vector<2x16xf32>
    %cst_93 = arith.constant 1.000000e+00 : f32
    %220 = vector.broadcast %cst_93 : f32 to vector<2x16xf32>
    %221 = arith.addf %220, %219 : vector<2x16xf32>
    %cst_94 = arith.constant 1.000000e+00 : f32
    %222 = vector.broadcast %cst_94 : f32 to vector<2x16xf32>
    %223 = arith.divf %222, %221 : vector<2x16xf32>
    %224 = vector.extract_strided_slice %215 {offsets = [0, 16], sizes = [2, 16], strides = [1, 1]} : vector<2x64xf32> to vector<2x16xf32>
    %cst_95 = arith.constant 0.000000e+00 : f32
    %225 = vector.broadcast %cst_95 : f32 to vector<2x16xf32>
    %226 = arith.subf %225, %224 : vector<2x16xf32>
    %227 = math.exp %226 : vector<2x16xf32>
    %cst_96 = arith.constant 1.000000e+00 : f32
    %228 = vector.broadcast %cst_96 : f32 to vector<2x16xf32>
    %229 = arith.addf %228, %227 : vector<2x16xf32>
    %cst_97 = arith.constant 1.000000e+00 : f32
    %230 = vector.broadcast %cst_97 : f32 to vector<2x16xf32>
    %231 = arith.divf %230, %229 : vector<2x16xf32>
    %232 = vector.extract_strided_slice %215 {offsets = [0, 32], sizes = [2, 16], strides = [1, 1]} : vector<2x64xf32> to vector<2x16xf32>
    %233 = math.tanh %232 : vector<2x16xf32>
    %234 = vector.extract_strided_slice %215 {offsets = [0, 48], sizes = [2, 16], strides = [1, 1]} : vector<2x64xf32> to vector<2x16xf32>
    %cst_98 = arith.constant 0.000000e+00 : f32
    %235 = vector.broadcast %cst_98 : f32 to vector<2x16xf32>
    %236 = arith.subf %235, %234 : vector<2x16xf32>
    %237 = math.exp %236 : vector<2x16xf32>
    %cst_99 = arith.constant 1.000000e+00 : f32
    %238 = vector.broadcast %cst_99 : f32 to vector<2x16xf32>
    %239 = arith.addf %238, %237 : vector<2x16xf32>
    %cst_100 = arith.constant 1.000000e+00 : f32
    %240 = vector.broadcast %cst_100 : f32 to vector<2x16xf32>
    %241 = arith.divf %240, %239 : vector<2x16xf32>
    %242 = arith.mulf %231, %197 : vector<2x16xf32>
    %243 = arith.mulf %223, %233 : vector<2x16xf32>
    %244 = arith.addf %242, %243 : vector<2x16xf32>
    %245 = math.tanh %244 : vector<2x16xf32>
    %246 = arith.mulf %241, %245 : vector<2x16xf32>
    %247 = arith.truncf %246 : vector<2x16xf32> to vector<2x16xbf16>
    %c0_101 = arith.constant 0 : index
    %248 = arith.index_cast %208 : i32 to index
    %c0_102 = arith.constant 0 : index
    %c0_103 = arith.constant 0 : index
    %249 = vector.load %arg8[%c0_101, %248, %c0_102, %c0_103] : memref<1x8x2x16xbf16, #tpu.memory_space<vmem>>, vector<1x1x2x16xbf16>
    %250 = vector.shape_cast %249 : vector<1x1x2x16xbf16> to vector<2x16xbf16>
    %251 = vector.shape_cast %247 : vector<2x16xbf16> to vector<1x1x2x16xbf16>
    tpu.vector_store %arg8[%c0_101, %248, %c0_102, %c0_103], %251 {strides = array<i32>} : memref<1x8x2x16xbf16, #tpu.memory_space<vmem>>, vector<1x1x2x16xbf16>,
    %c5_i32 = arith.constant 5 : i32
    %c2_i32_104 = arith.constant 2 : i32
    %252 = arith.muli %c2_i32_104, %c5_i32 : i32
    %c7_i32_105 = arith.constant 7 : i32
    %253 = arith.subi %c7_i32_105, %252 : i32
    %254 = arith.muli %arg0, %253 : i32
    %255 = arith.addi %c5_i32, %254 : i32
    %c2_i32_106 = arith.constant 2 : i32
    %256 = arith.muli %255, %c2_i32_106 : i32
    %257 = tpu.assume_multiple %256, 2 : i32
    %258 = arith.truncf %246 : vector<2x16xf32> to vector<2x16xbf16>
    %cst_107 = arith.constant dense<0.000000e+00> : vector<2x64xf32>
    %259 = tpu.matmul %258, %14, %cst_107 {dimension_numbers = #tpu.dot_dimension_numbers<[1], [0], [0], [1], [0, 0, 1, 1], [], []>} : vector<2x16xbf16>, vector<16x64xbf16>, vector<2x64xf32> -> vector<2x64xf32>
    %260 = arith.index_cast %257 : i32 to index
    %c0_108 = arith.constant 0 : index
    %261 = vector.load %arg13[%260, %c0_108] : memref<16x64xf32, #tpu.memory_space<vmem>>, vector<2x64xf32>
    %262 = arith.addf %259, %261 : vector<2x64xf32>
    %263 = vector.extract_strided_slice %262 {offsets = [0, 0], sizes = [2, 16], strides = [1, 1]} : vector<2x64xf32> to vector<2x16xf32>
    %cst_109 = arith.constant 0.000000e+00 : f32
    %264 = vector.broadcast %cst_109 : f32 to vector<2x16xf32>
    %265 = arith.subf %264, %263 : vector<2x16xf32>
    %266 = math.exp %265 : vector<2x16xf32>
    %cst_110 = arith.constant 1.000000e+00 : f32
    %267 = vector.broadcast %cst_110 : f32 to vector<2x16xf32>
    %268 = arith.addf %267, %266 : vector<2x16xf32>
    %cst_111 = arith.constant 1.000000e+00 : f32
    %269 = vector.broadcast %cst_111 : f32 to vector<2x16xf32>
    %270 = arith.divf %269, %268 : vector<2x16xf32>
    %271 = vector.extract_strided_slice %262 {offsets = [0, 16], sizes = [2, 16], strides = [1, 1]} : vector<2x64xf32> to vector<2x16xf32>
    %cst_112 = arith.constant 0.000000e+00 : f32
    %272 = vector.broadcast %cst_112 : f32 to vector<2x16xf32>
    %273 = arith.subf %272, %271 : vector<2x16xf32>
    %274 = math.exp %273 : vector<2x16xf32>
    %cst_113 = arith.constant 1.000000e+00 : f32
    %275 = vector.broadcast %cst_113 : f32 to vector<2x16xf32>
    %276 = arith.addf %275, %274 : vector<2x16xf32>
    %cst_114 = arith.constant 1.000000e+00 : f32
    %277 = vector.broadcast %cst_114 : f32 to vector<2x16xf32>
    %278 = arith.divf %277, %276 : vector<2x16xf32>
    %279 = vector.extract_strided_slice %262 {offsets = [0, 32], sizes = [2, 16], strides = [1, 1]} : vector<2x64xf32> to vector<2x16xf32>
    %280 = math.tanh %279 : vector<2x16xf32>
    %281 = vector.extract_strided_slice %262 {offsets = [0, 48], sizes = [2, 16], strides = [1, 1]} : vector<2x64xf32> to vector<2x16xf32>
    %cst_115 = arith.constant 0.000000e+00 : f32
    %282 = vector.broadcast %cst_115 : f32 to vector<2x16xf32>
    %283 = arith.subf %282, %281 : vector<2x16xf32>
    %284 = math.exp %283 : vector<2x16xf32>
    %cst_116 = arith.constant 1.000000e+00 : f32
    %285 = vector.broadcast %cst_116 : f32 to vector<2x16xf32>
    %286 = arith.addf %285, %284 : vector<2x16xf32>
    %cst_117 = arith.constant 1.000000e+00 : f32
    %287 = vector.broadcast %cst_117 : f32 to vector<2x16xf32>
    %288 = arith.divf %287, %286 : vector<2x16xf32>
    %289 = arith.mulf %278, %244 : vector<2x16xf32>
    %290 = arith.mulf %270, %280 : vector<2x16xf32>
    %291 = arith.addf %289, %290 : vector<2x16xf32>
    %292 = math.tanh %291 : vector<2x16xf32>
    %293 = arith.mulf %288, %292 : vector<2x16xf32>
    %294 = arith.truncf %293 : vector<2x16xf32> to vector<2x16xbf16>
    %c0_118 = arith.constant 0 : index
    %295 = arith.index_cast %255 : i32 to index
    %c0_119 = arith.constant 0 : index
    %c0_120 = arith.constant 0 : index
    %296 = vector.load %arg8[%c0_118, %295, %c0_119, %c0_120] : memref<1x8x2x16xbf16, #tpu.memory_space<vmem>>, vector<1x1x2x16xbf16>
    %297 = vector.shape_cast %296 : vector<1x1x2x16xbf16> to vector<2x16xbf16>
    %298 = vector.shape_cast %294 : vector<2x16xbf16> to vector<1x1x2x16xbf16>
    tpu.vector_store %arg8[%c0_118, %295, %c0_119, %c0_120], %298 {strides = array<i32>} : memref<1x8x2x16xbf16, #tpu.memory_space<vmem>>, vector<1x1x2x16xbf16>,
    %c6_i32 = arith.constant 6 : i32
    %c2_i32_121 = arith.constant 2 : i32
    %299 = arith.muli %c2_i32_121, %c6_i32 : i32
    %c7_i32_122 = arith.constant 7 : i32
    %300 = arith.subi %c7_i32_122, %299 : i32
    %301 = arith.muli %arg0, %300 : i32
    %302 = arith.addi %c6_i32, %301 : i32
    %c2_i32_123 = arith.constant 2 : i32
    %303 = arith.muli %302, %c2_i32_123 : i32
    %304 = tpu.assume_multiple %303, 2 : i32
    %305 = arith.truncf %293 : vector<2x16xf32> to vector<2x16xbf16>
    %cst_124 = arith.constant dense<0.000000e+00> : vector<2x64xf32>
    %306 = tpu.matmul %305, %14, %cst_124 {dimension_numbers = #tpu.dot_dimension_numbers<[1], [0], [0], [1], [0, 0, 1, 1], [], []>} : vector<2x16xbf16>, vector<16x64xbf16>, vector<2x64xf32> -> vector<2x64xf32>
    %307 = arith.index_cast %304 : i32 to index
    %c0_125 = arith.constant 0 : index
    %308 = vector.load %arg13[%307, %c0_125] : memref<16x64xf32, #tpu.memory_space<vmem>>, vector<2x64xf32>
    %309 = arith.addf %306, %308 : vector<2x64xf32>
    %310 = vector.extract_strided_slice %309 {offsets = [0, 0], sizes = [2, 16], strides = [1, 1]} : vector<2x64xf32> to vector<2x16xf32>
    %cst_126 = arith.constant 0.000000e+00 : f32
    %311 = vector.broadcast %cst_126 : f32 to vector<2x16xf32>
    %312 = arith.subf %311, %310 : vector<2x16xf32>
    %313 = math.exp %312 : vector<2x16xf32>
    %cst_127 = arith.constant 1.000000e+00 : f32
    %314 = vector.broadcast %cst_127 : f32 to vector<2x16xf32>
    %315 = arith.addf %314, %313 : vector<2x16xf32>
    %cst_128 = arith.constant 1.000000e+00 : f32
    %316 = vector.broadcast %cst_128 : f32 to vector<2x16xf32>
    %317 = arith.divf %316, %315 : vector<2x16xf32>
    %318 = vector.extract_strided_slice %309 {offsets = [0, 16], sizes = [2, 16], strides = [1, 1]} : vector<2x64xf32> to vector<2x16xf32>
    %cst_129 = arith.constant 0.000000e+00 : f32
    %319 = vector.broadcast %cst_129 : f32 to vector<2x16xf32>
    %320 = arith.subf %319, %318 : vector<2x16xf32>
    %321 = math.exp %320 : vector<2x16xf32>
    %cst_130 = arith.constant 1.000000e+00 : f32
    %322 = vector.broadcast %cst_130 : f32 to vector<2x16xf32>
    %323 = arith.addf %322, %321 : vector<2x16xf32>
    %cst_131 = arith.constant 1.000000e+00 : f32
    %324 = vector.broadcast %cst_131 : f32 to vector<2x16xf32>
    %325 = arith.divf %324, %323 : vector<2x16xf32>
    %326 = vector.extract_strided_slice %309 {offsets = [0, 32], sizes = [2, 16], strides = [1, 1]} : vector<2x64xf32> to vector<2x16xf32>
    %327 = math.tanh %326 : vector<2x16xf32>
    %328 = vector.extract_strided_slice %309 {offsets = [0, 48], sizes = [2, 16], strides = [1, 1]} : vector<2x64xf32> to vector<2x16xf32>
    %cst_132 = arith.constant 0.000000e+00 : f32
    %329 = vector.broadcast %cst_132 : f32 to vector<2x16xf32>
    %330 = arith.subf %329, %328 : vector<2x16xf32>
    %331 = math.exp %330 : vector<2x16xf32>
    %cst_133 = arith.constant 1.000000e+00 : f32
    %332 = vector.broadcast %cst_133 : f32 to vector<2x16xf32>
    %333 = arith.addf %332, %331 : vector<2x16xf32>
    %cst_134 = arith.constant 1.000000e+00 : f32
    %334 = vector.broadcast %cst_134 : f32 to vector<2x16xf32>
    %335 = arith.divf %334, %333 : vector<2x16xf32>
    %336 = arith.mulf %325, %291 : vector<2x16xf32>
    %337 = arith.mulf %317, %327 : vector<2x16xf32>
    %338 = arith.addf %336, %337 : vector<2x16xf32>
    %339 = math.tanh %338 : vector<2x16xf32>
    %340 = arith.mulf %335, %339 : vector<2x16xf32>
    %341 = arith.truncf %340 : vector<2x16xf32> to vector<2x16xbf16>
    %c0_135 = arith.constant 0 : index
    %342 = arith.index_cast %302 : i32 to index
    %c0_136 = arith.constant 0 : index
    %c0_137 = arith.constant 0 : index
    %343 = vector.load %arg8[%c0_135, %342, %c0_136, %c0_137] : memref<1x8x2x16xbf16, #tpu.memory_space<vmem>>, vector<1x1x2x16xbf16>
    %344 = vector.shape_cast %343 : vector<1x1x2x16xbf16> to vector<2x16xbf16>
    %345 = vector.shape_cast %341 : vector<2x16xbf16> to vector<1x1x2x16xbf16>
    tpu.vector_store %arg8[%c0_135, %342, %c0_136, %c0_137], %345 {strides = array<i32>} : memref<1x8x2x16xbf16, #tpu.memory_space<vmem>>, vector<1x1x2x16xbf16>,
    %c7_i32_138 = arith.constant 7 : i32
    %c2_i32_139 = arith.constant 2 : i32
    %346 = arith.muli %c2_i32_139, %c7_i32_138 : i32
    %c7_i32_140 = arith.constant 7 : i32
    %347 = arith.subi %c7_i32_140, %346 : i32
    %348 = arith.muli %arg0, %347 : i32
    %349 = arith.addi %c7_i32_138, %348 : i32
    %c2_i32_141 = arith.constant 2 : i32
    %350 = arith.muli %349, %c2_i32_141 : i32
    %351 = tpu.assume_multiple %350, 2 : i32
    %352 = arith.truncf %340 : vector<2x16xf32> to vector<2x16xbf16>
    %cst_142 = arith.constant dense<0.000000e+00> : vector<2x64xf32>
    %353 = tpu.matmul %352, %14, %cst_142 {dimension_numbers = #tpu.dot_dimension_numbers<[1], [0], [0], [1], [0, 0, 1, 1], [], []>} : vector<2x16xbf16>, vector<16x64xbf16>, vector<2x64xf32> -> vector<2x64xf32>
    %354 = arith.index_cast %351 : i32 to index
    %c0_143 = arith.constant 0 : index
    %355 = vector.load %arg13[%354, %c0_143] : memref<16x64xf32, #tpu.memory_space<vmem>>, vector<2x64xf32>
    %356 = arith.addf %353, %355 : vector<2x64xf32>
    %357 = vector.extract_strided_slice %356 {offsets = [0, 0], sizes = [2, 16], strides = [1, 1]} : vector<2x64xf32> to vector<2x16xf32>
    %cst_144 = arith.constant 0.000000e+00 : f32
    %358 = vector.broadcast %cst_144 : f32 to vector<2x16xf32>
    %359 = arith.subf %358, %357 : vector<2x16xf32>
    %360 = math.exp %359 : vector<2x16xf32>
    %cst_145 = arith.constant 1.000000e+00 : f32
    %361 = vector.broadcast %cst_145 : f32 to vector<2x16xf32>
    %362 = arith.addf %361, %360 : vector<2x16xf32>
    %cst_146 = arith.constant 1.000000e+00 : f32
    %363 = vector.broadcast %cst_146 : f32 to vector<2x16xf32>
    %364 = arith.divf %363, %362 : vector<2x16xf32>
    %365 = vector.extract_strided_slice %356 {offsets = [0, 16], sizes = [2, 16], strides = [1, 1]} : vector<2x64xf32> to vector<2x16xf32>
    %cst_147 = arith.constant 0.000000e+00 : f32
    %366 = vector.broadcast %cst_147 : f32 to vector<2x16xf32>
    %367 = arith.subf %366, %365 : vector<2x16xf32>
    %368 = math.exp %367 : vector<2x16xf32>
    %cst_148 = arith.constant 1.000000e+00 : f32
    %369 = vector.broadcast %cst_148 : f32 to vector<2x16xf32>
    %370 = arith.addf %369, %368 : vector<2x16xf32>
    %cst_149 = arith.constant 1.000000e+00 : f32
    %371 = vector.broadcast %cst_149 : f32 to vector<2x16xf32>
    %372 = arith.divf %371, %370 : vector<2x16xf32>
    %373 = vector.extract_strided_slice %356 {offsets = [0, 32], sizes = [2, 16], strides = [1, 1]} : vector<2x64xf32> to vector<2x16xf32>
    %374 = math.tanh %373 : vector<2x16xf32>
    %375 = vector.extract_strided_slice %356 {offsets = [0, 48], sizes = [2, 16], strides = [1, 1]} : vector<2x64xf32> to vector<2x16xf32>
    %cst_150 = arith.constant 0.000000e+00 : f32
    %376 = vector.broadcast %cst_150 : f32 to vector<2x16xf32>
    %377 = arith.subf %376, %375 : vector<2x16xf32>
    %378 = math.exp %377 : vector<2x16xf32>
    %cst_151 = arith.constant 1.000000e+00 : f32
    %379 = vector.broadcast %cst_151 : f32 to vector<2x16xf32>
    %380 = arith.addf %379, %378 : vector<2x16xf32>
    %cst_152 = arith.constant 1.000000e+00 : f32
    %381 = vector.broadcast %cst_152 : f32 to vector<2x16xf32>
    %382 = arith.divf %381, %380 : vector<2x16xf32>
    %383 = arith.mulf %372, %338 : vector<2x16xf32>
    %384 = arith.mulf %364, %374 : vector<2x16xf32>
    %385 = arith.addf %383, %384 : vector<2x16xf32>
    %386 = math.tanh %385 : vector<2x16xf32>
    %387 = arith.mulf %382, %386 : vector<2x16xf32>
    %388 = arith.truncf %387 : vector<2x16xf32> to vector<2x16xbf16>
    %c0_153 = arith.constant 0 : index
    %389 = arith.index_cast %349 : i32 to index
    %c0_154 = arith.constant 0 : index
    %c0_155 = arith.constant 0 : index
    %390 = vector.load %arg8[%c0_153, %389, %c0_154, %c0_155] : memref<1x8x2x16xbf16, #tpu.memory_space<vmem>>, vector<1x1x2x16xbf16>
    %391 = vector.shape_cast %390 : vector<1x1x2x16xbf16> to vector<2x16xbf16>
    %392 = vector.shape_cast %388 : vector<2x16xbf16> to vector<1x1x2x16xbf16>
    tpu.vector_store %arg8[%c0_153, %389, %c0_154, %c0_155], %392 {strides = array<i32>} : memref<1x8x2x16xbf16, #tpu.memory_space<vmem>>, vector<1x1x2x16xbf16>,
    %c8_i32 = arith.constant 8 : i32
    %c0_156 = arith.constant 0 : index
    %c0_157 = arith.constant 0 : index
    %393 = vector.load %arg11[%c0_156, %c0_157] : memref<2x16xf32, #tpu.memory_space<vmem>>, vector<2x16xf32>
    tpu.vector_store %arg11[%c0_156, %c0_157], %387 {strides = array<i32>} : memref<2x16xf32, #tpu.memory_space<vmem>>, vector<2x16xf32>,
    %c0_158 = arith.constant 0 : index
    %c0_159 = arith.constant 0 : index
    %394 = vector.load %arg12[%c0_158, %c0_159] : memref<2x16xf32, #tpu.memory_space<vmem>>, vector<2x16xf32>
    tpu.vector_store %arg12[%c0_158, %c0_159], %385 {strides = array<i32>} : memref<2x16xf32, #tpu.memory_space<vmem>>, vector<2x16xf32>,
    %c0_i32_160 = arith.constant 0 : i32
    %395 = arith.cmpi eq, %arg1, %c0_i32_160 : i32
    %396 = arith.extui %395 : i1 to i32
    %c0_i32_161 = arith.constant 0 : i32
    %397 = arith.cmpi ne, %396, %c0_i32_161 : i32
    scf.if %397 {
      %c0_162 = arith.constant 0 : index
      %c0_163 = arith.constant 0 : index
      %c0_164 = arith.constant 0 : index
      %398 = vector.load %arg9[%c0_162, %c0_163, %c0_164] : memref<1x2x16xf32, #tpu.memory_space<vmem>>, vector<1x2x16xf32>
      %399 = vector.shape_cast %398 : vector<1x2x16xf32> to vector<2x16xf32>
      %400 = vector.shape_cast %387 : vector<2x16xf32> to vector<1x2x16xf32>
      tpu.vector_store %arg9[%c0_162, %c0_163, %c0_164], %400 {strides = array<i32>} : memref<1x2x16xf32, #tpu.memory_space<vmem>>, vector<1x2x16xf32>,
      %c0_165 = arith.constant 0 : index
      %c0_166 = arith.constant 0 : index
      %c0_167 = arith.constant 0 : index
      %401 = vector.load %arg10[%c0_165, %c0_166, %c0_167] : memref<1x2x16xf32, #tpu.memory_space<vmem>>, vector<1x2x16xf32>
      %402 = vector.shape_cast %401 : vector<1x2x16xf32> to vector<2x16xf32>
      %403 = vector.shape_cast %385 : vector<2x16xf32> to vector<1x2x16xf32>
      tpu.vector_store %arg10[%c0_165, %c0_166, %c0_167], %403 {strides = array<i32>} : memref<1x2x16xf32, #tpu.memory_space<vmem>>, vector<1x2x16xf32>,
    } else {
    }
    return
  }
  func.func @transform_0(%arg0: i32, %arg1: i32) -> (i32, i32, i32) {
    %c2_i32 = arith.constant 2 : i32
    %0 = arith.muli %c2_i32, %arg1 : i32
    %c0_i32 = arith.constant 0 : i32
    %1 = arith.subi %c0_i32, %0 : i32
    %2 = arith.muli %arg0, %1 : i32
    %3 = arith.addi %arg1, %2 : i32
    %c0_i32_0 = arith.constant 0 : i32
    %c0_i32_1 = arith.constant 0 : i32
    %c0_i32_2 = arith.constant 0 : i32
    return %c0_i32_0, %3, %c0_i32_1 : i32, i32, i32
  }
  func.func @transform_1(%arg0: i32, %arg1: i32) -> (i32, i32, i32, i32) {
    %c0_i32 = arith.constant 0 : i32
    %c0_i32_0 = arith.constant 0 : i32
    %c0_i32_1 = arith.constant 0 : i32
    %c0_i32_2 = arith.constant 0 : i32
    return %arg0, %c0_i32, %c0_i32_0, %c0_i32_1 : i32, i32, i32, i32
  }
  func.func @transform_2(%arg0: i32, %arg1: i32) -> (i32, i32, i32) {
    %c0_i32 = arith.constant 0 : i32
    %c0_i32_0 = arith.constant 0 : i32
    %c0_i32_1 = arith.constant 0 : i32
    return %arg0, %c0_i32, %c0_i32_0 : i32, i32, i32
  }
  func.func @transform_3(%arg0: i32, %arg1: i32) -> (i32, i32, i32) {
    %c0_i32 = arith.constant 0 : i32
    %c0_i32_0 = arith.constant 0 : i32
    %c0_i32_1 = arith.constant 0 : i32
    return %arg0, %c0_i32, %c0_i32_0 : i32, i32, i32
  }
  func.func @transform_4(%arg0: i32, %arg1: i32) -> (i32, i32, i32) {
    %c0_i32 = arith.constant 0 : i32
    %c0_i32_0 = arith.constant 0 : i32
    %c0_i32_1 = arith.constant 0 : i32
    return %arg0, %c0_i32, %c0_i32_0 : i32, i32, i32
  }
  func.func @transform_5(%arg0: i32, %arg1: i32) -> (i32, i32, i32) {
    %c0_i32 = arith.constant 0 : i32
    %c0_i32_0 = arith.constant 0 : i32
    %c0_i32_1 = arith.constant 0 : i32
    return %arg0, %c0_i32, %c0_i32_0 : i32, i32, i32
  }
  func.func @transform_6(%arg0: i32, %arg1: i32) -> (i32, i32, i32, i32) {
    %c2_i32 = arith.constant 2 : i32
    %0 = arith.muli %c2_i32, %arg1 : i32
    %c0_i32 = arith.constant 0 : i32
    %1 = arith.subi %c0_i32, %0 : i32
    %2 = arith.muli %arg0, %1 : i32
    %3 = arith.addi %arg1, %2 : i32
    %c0_i32_0 = arith.constant 0 : i32
    %c0_i32_1 = arith.constant 0 : i32
    %c0_i32_2 = arith.constant 0 : i32
    return %arg0, %3, %c0_i32_0, %c0_i32_1 : i32, i32, i32, i32
  }
  func.func @transform_7(%arg0: i32, %arg1: i32) -> (i32, i32, i32) {
    %c0_i32 = arith.constant 0 : i32
    %c0_i32_0 = arith.constant 0 : i32
    %c0_i32_1 = arith.constant 0 : i32
    return %arg0, %c0_i32, %c0_i32_0 : i32, i32, i32
  }
  func.func @transform_8(%arg0: i32, %arg1: i32) -> (i32, i32, i32) {
    %c0_i32 = arith.constant 0 : i32
    %c0_i32_0 = arith.constant 0 : i32
    %c0_i32_1 = arith.constant 0 : i32
    return %arg0, %c0_i32, %c0_i32_0 : i32, i32, i32
  }
}

</mosaic_0001>

<llo_original>
// kernel: tpu_custom_call.1
$region0: #{tpu_custom_call.1}
  #allocation0 [shape = 'u32[]', space=smem, size = 0x4, offset = 0x4, fixed_abs, tag = 'smem constant byte address 0x4 - core index']
  #allocation1 [shape = 'u32[144,128]{1,0:T(1,128)}', space=vmem, size = 0x12000, scoped, tag = 'internal scratch']
  #allocation2 [shape = 'f32[2,16]{1,0:T(2,128)}', space=vmem, size = 0x400, scoped, tag = 'scratch operand']
  #allocation3 [shape = 'f32[2,16]{1,0:T(2,128)}', space=vmem, size = 0x400, scoped, tag = 'scratch operand']
  #allocation4 [shape = 'f32[16,64]{1,0:T(8,128)}', space=vmem, size = 0x2000, scoped, tag = 'scratch operand']
  %s0 = inlined_call_operand.hbm [shape: bf16[1,16,32], index: 0, kind: input, shape index: {}]
  %s1 = inlined_call_operand.hbm [shape: bf16[2,1,32,64], index: 1, kind: input, shape index: {}]
  %s2 = inlined_call_operand.hbm [shape: bf16[2,16,64], index: 2, kind: input, shape index: {}]
  %s3 = inlined_call_operand.hbm [shape: f32[2,1,64], index: 3, kind: input, shape index: {}]
  %s4 = inlined_call_operand.vmem [shape: f32[2,2,16], index: 4, kind: input, shape index: {}]
  %s5 = inlined_call_operand.vmem [shape: f32[2,2,16], index: 5, kind: input, shape index: {}]
  %s6 = inlined_call_operand.hbm [shape: bf16[2,8,2,16], index: 6, kind: output, shape index: {0}]
  %s7 = inlined_call_operand.hbm [shape: f32[2,2,16], index: 7, kind: output, shape index: {1}]
  %s8 = inlined_call_operand.hbm [shape: f32[2,2,16], index: 8, kind: output, shape index: {2}]
  %9 = xla_tuple %s6, %s7, %s8
  %s10 = sld [smem:[#allocation0]]
  $region97: #{tpu_custom_call.1} parent=0
    _
  %s12 = ssub.s32 1, %s10
  %s13 = scalar_select 0, %s12, %s10
  $region1: #{tpu_custom_call.1} parent=0
    #allocation5 [shape = 'u8[8192]{0}', space=vmem, size = 0x2000, scoped, tag = 'input window, operand 0']
    #allocation6 [shape = 's32[2]{0}', space=sflag, size = 0x8, scoped, tag = 'scoped memory for tpu_custom_call.1']
    #allocation7 [shape = 's32[2]{0}', space=sflag, size = 0x8, scoped, tag = 'scoped memory for tpu_custom_call.1']
    #allocation8 [shape = 'u8[16384]{0}', space=vmem, size = 0x4000, scoped, tag = 'input window, operand 1']
    #allocation9 [shape = 's32[2]{0}', space=sflag, size = 0x8, scoped, tag = 'scoped memory for tpu_custom_call.1']
    #allocation10 [shape = 'u8[8192]{0}', space=vmem, size = 0x2000, scoped, tag = 'input window, operand 2']
    #allocation11 [shape = 'u8[1024]{0}', space=vmem, size = 0x400, scoped, tag = 'input window, operand 3']
    #allocation12 [shape = 's32[2]{0}', space=sflag, size = 0x8, scoped, tag = 'scoped memory for tpu_custom_call.1']
    #allocation13 [shape = 'u8[8192]{0}', space=vmem, size = 0x2000, scoped, tag = 'output window, operand 0']
    #allocation14 [shape = 'u8[2048]{0}', space=vmem, size = 0x800, scoped, tag = 'output window, operand 1']
    #allocation15 [shape = 's32[2]{0}', space=sflag, size = 0x8, scoped, tag = 'scoped memory for tpu_custom_call.1']
    #allocation16 [shape = 'u8[2048]{0}', space=vmem, size = 0x800, scoped, tag = 'output window, operand 2']
    %14 = vsyncpa [#allocation6], 0
    %s15 = scalar_lea.sflag [#allocation6], 1
    %16 = vsyncpa %s15, 0
    %17 = vsyncpa [#allocation9], 0
    %s18 = scalar_lea.sflag [#allocation9], 1
    %19 = vsyncpa %s18, 0
    %20 = vsyncpa [#allocation12], 0
    %s21 = scalar_lea.sflag [#allocation12], 1
    %22 = vsyncpa %s21, 0
    %23 = vsyncpa [#allocation7], 0
    %s24 = scalar_lea.sflag [#allocation7], 1
    %25 = vsyncpa %s24, 0
    %26 = vsyncpa [#allocation15], 0
    %s27 = scalar_lea.sflag [#allocation15], 1
    %28 = vsyncpa %s27, 0
    loop: start=0, step=1, limit=4
    $region2: #{tpu_custom_call.1} parent=1 // loop_pre_header
      _
    $region3: #{tpu_custom_call.1} parent=1 // loop_header
      %s30 = sphi 0, %s34
      %p31 = scmp.ge.s32.totalorder %s30, 4
      %s37 = sphi 0, %s49
      %s38 = sphi 0, %s45
      %s39 = sphi 0, %s37
      %s40 = sphi 0, %s38
      %s41 = sphi 0, %s39
      %s42 = sphi 0, %s40
      %s60 = sphi 0, %s62
      %s63 = sphi 0, %s60
      %s64 = sphi 0, %s63
      %s80 = sphi 0, %s64
      %s86 = sphi 0, %s88
      %s89 = sphi 0, %s86
      %s90 = sphi 0, %s89
      %s106 = sphi 0, %s90
      %s112 = sphi 0, %s114
      %s115 = sphi 0, %s112
      %s116 = sphi 0, %s115
      %s132 = sphi 0, %s116
      %s138 = sphi 0, %s140
      %s141 = sphi 0, %s138
      %s142 = sphi 0, %s141
      %s158 = sphi 0, %s142
      %s164 = sphi 0, %s166
      %s167 = sphi 0, %s164
      %s168 = sphi 0, %s167
      %s184 = sphi 0, %s168
      %s190 = sphi 0, %s192
      %s193 = sphi 0, %s190
      %s194 = sphi 0, %s193
      %s210 = sphi 0, %s194
      %s226 = sphi 0, %s228
      %s229 = sphi 0, %s226
      %s230 = sphi 0, %s229
      %s246 = sphi 0, %s230
      %s252 = sphi 0, %s254
      %s255 = sphi 0, %s252
      %s256 = sphi 0, %s255
      %s272 = sphi 0, %s256
      %s278 = sphi 0, %s280
      %s281 = sphi 0, %s278
      %s282 = sphi 0, %s281
      %s298 = sphi 0, %s282
    $region4: #{tpu_custom_call.1} parent=1 // loop_header_branch
      %33 = sbr.rel (%p31) target = $region8
    $region5: #{tpu_custom_call.1} parent=1 // loop_body
      %s35 = ssub.s32 %s30, 1
      %s36 = ssub.s32 %s30, 2
      %s43 = sadd.s32 1, %s38
      %p44 = scmp.ge.s32.totalorder %s43, 1
      %s45 = scalar_select %p44, 0, %s43
      %s46 = sadd.s32 1, %s37
      %s47 = scalar_select %p44, %s46, %s37
      %p48 = scmp.ge.s32.totalorder %s47, 2
      %s49 = scalar_select %p48, 0, %s47
      %s50 = smul.u32 %s38, 2
      %s51 = ssub.s32 0, %s50
      %s52 = smul.u32 %s37, %s51
      %s53 = sadd.s32 %s38, %s52
      %s54 = smul.u32 %s45, 2
      %s55 = ssub.s32 0, %s54
      %s56 = smul.u32 %s49, %s55
      %s57 = sadd.s32 %s45, %s56
      %s58 = ssub.s32 %s53, %s57
      %p59 = scmp.eq.s32.totalorder %s58, 0
      %s61 = sadd.s32 %s60, 1
      %s62 = scalar_select %p59, %s60, %s61
      %p65 = pneg %p59
      %p66 = scmp.eq.s32.totalorder %s30, 1
      %p67 = por %p65, %p66
      %p68 = scmp.ne.s32.totalorder %s60, %s63
      %p69 = scmp.eq.s32.totalorder %s30, 0
      %p70 = por %p68, %p69
      %p71 = scmp.ne.s32.totalorder %s60, %s63
      %p72 = scmp.eq.s32.totalorder %s35, 1
      %p73 = por %p71, %p72
      %p74 = scmp.ne.s32.totalorder %s63, %s64
      %p75 = scmp.eq.s32.totalorder %s35, 0
      %p76 = por %p74, %p75
      %p77 = scmp.ne.s32.totalorder %s63, %s64
      %p78 = scmp.eq.s32.totalorder %s36, 1
      %p79 = por %p77, %p78
      %p81 = scmp.ne.s32.totalorder %s64, %s80
      %p82 = scmp.eq.s32.totalorder %s36, 0
      %p83 = por %p81, %p82
      %s84 = ssub.s32 %s37, %s49
      %p85 = scmp.eq.s32.totalorder %s84, 0
      %s87 = sadd.s32 %s86, 1
      %s88 = scalar_select %p85, %s86, %s87
      %p91 = pneg %p85
      %p92 = scmp.eq.s32.totalorder %s30, 1
      %p93 = por %p91, %p92
      %p94 = scmp.ne.s32.totalorder %s86, %s89
      %p95 = scmp.eq.s32.totalorder %s30, 0
      %p96 = por %p94, %p95
      %p97 = scmp.ne.s32.totalorder %s86, %s89
      %p98 = scmp.eq.s32.totalorder %s35, 1
      %p99 = por %p97, %p98
      %p100 = scmp.ne.s32.totalorder %s89, %s90
      %p101 = scmp.eq.s32.totalorder %s35, 0
      %p102 = por %p100, %p101
      %p103 = scmp.ne.s32.totalorder %s89, %s90
      %p104 = scmp.eq.s32.totalorder %s36, 1
      %p105 = por %p103, %p104
      %p107 = scmp.ne.s32.totalorder %s90, %s106
      %p108 = scmp.eq.s32.totalorder %s36, 0
      %p109 = por %p107, %p108
      %s110 = ssub.s32 %s37, %s49
      %p111 = scmp.eq.s32.totalorder %s110, 0
      %s113 = sadd.s32 %s112, 1
      %s114 = scalar_select %p111, %s112, %s113
      %p117 = pneg %p111
      %p118 = scmp.eq.s32.totalorder %s30, 1
      %p119 = por %p117, %p118
      %p120 = scmp.ne.s32.totalorder %s112, %s115
      %p121 = scmp.eq.s32.totalorder %s30, 0
      %p122 = por %p120, %p121
      %p123 = scmp.ne.s32.totalorder %s112, %s115
      %p124 = scmp.eq.s32.totalorder %s35, 1
      %p125 = por %p123, %p124
      %p126 = scmp.ne.s32.totalorder %s115, %s116
      %p127 = scmp.eq.s32.totalorder %s35, 0
      %p128 = por %p126, %p127
      %p129 = scmp.ne.s32.totalorder %s115, %s116
      %p130 = scmp.eq.s32.totalorder %s36, 1
      %p131 = por %p129, %p130
      %p133 = scmp.ne.s32.totalorder %s116, %s132
      %p134 = scmp.eq.s32.totalorder %s36, 0
      %p135 = por %p133, %p134
      %s136 = ssub.s32 %s37, %s49
      %p137 = scmp.eq.s32.totalorder %s136, 0
      %s139 = sadd.s32 %s138, 1
      %s140 = scalar_select %p137, %s138, %s139
      %p143 = pneg %p137
      %p144 = scmp.eq.s32.totalorder %s30, 1
      %p145 = por %p143, %p144
      %p146 = scmp.ne.s32.totalorder %s138, %s141
      %p147 = scmp.eq.s32.totalorder %s30, 0
      %p148 = por %p146, %p147
      %p149 = scmp.ne.s32.totalorder %s138, %s141
      %p150 = scmp.eq.s32.totalorder %s35, 1
      %p151 = por %p149, %p150
      %p152 = scmp.ne.s32.totalorder %s141, %s142
      %p153 = scmp.eq.s32.totalorder %s35, 0
      %p154 = por %p152, %p153
      %p155 = scmp.ne.s32.totalorder %s141, %s142
      %p156 = scmp.eq.s32.totalorder %s36, 1
      %p157 = por %p155, %p156
      %p159 = scmp.ne.s32.totalorder %s142, %s158
      %p160 = scmp.eq.s32.totalorder %s36, 0
      %p161 = por %p159, %p160
      %s162 = ssub.s32 %s37, %s49
      %p163 = scmp.eq.s32.totalorder %s162, 0
      %s165 = sadd.s32 %s164, 1
      %s166 = scalar_select %p163, %s164, %s165
      %p169 = pneg %p163
      %p170 = scmp.eq.s32.totalorder %s30, 1
      %p171 = por %p169, %p170
      %p172 = scmp.ne.s32.totalorder %s164, %s167
      %p173 = scmp.eq.s32.totalorder %s30, 0
      %p174 = por %p172, %p173
      %p175 = scmp.ne.s32.totalorder %s164, %s167
      %p176 = scmp.eq.s32.totalorder %s35, 1
      %p177 = por %p175, %p176
      %p178 = scmp.ne.s32.totalorder %s167, %s168
      %p179 = scmp.eq.s32.totalorder %s35, 0
      %p180 = por %p178, %p179
      %p181 = scmp.ne.s32.totalorder %s167, %s168
      %p182 = scmp.eq.s32.totalorder %s36, 1
      %p183 = por %p181, %p182
      %p185 = scmp.ne.s32.totalorder %s168, %s184
      %p186 = scmp.eq.s32.totalorder %s36, 0
      %p187 = por %p185, %p186
      %s188 = ssub.s32 %s37, %s49
      %p189 = scmp.eq.s32.totalorder %s188, 0
      %s191 = sadd.s32 %s190, 1
      %s192 = scalar_select %p189, %s190, %s191
      %p195 = pneg %p189
      %p196 = scmp.eq.s32.totalorder %s30, 1
      %p197 = por %p195, %p196
      %p198 = scmp.ne.s32.totalorder %s190, %s193
      %p199 = scmp.eq.s32.totalorder %s30, 0
      %p200 = por %p198, %p199
      %p201 = scmp.ne.s32.totalorder %s190, %s193
      %p202 = scmp.eq.s32.totalorder %s35, 1
      %p203 = por %p201, %p202
      %p204 = scmp.ne.s32.totalorder %s193, %s194
      %p205 = scmp.eq.s32.totalorder %s35, 0
      %p206 = por %p204, %p205
      %p207 = scmp.ne.s32.totalorder %s193, %s194
      %p208 = scmp.eq.s32.totalorder %s36, 1
      %p209 = por %p207, %p208
      %p211 = scmp.ne.s32.totalorder %s194, %s210
      %p212 = scmp.eq.s32.totalorder %s36, 0
      %p213 = por %p211, %p212
      %s214 = smul.u32 %s38, 2
      %s215 = ssub.s32 0, %s214
      %s216 = smul.u32 %s37, %s215
      %s217 = sadd.s32 %s38, %s216
      %s218 = smul.u32 %s45, 2
      %s219 = ssub.s32 0, %s218
      %s220 = smul.u32 %s49, %s219
      %s221 = sadd.s32 %s45, %s220
      %s222 = ssub.s32 %s37, %s49
      %s223 = ssub.s32 %s217, %s221
      %s224 = sor.u32 %s222, %s223
      %p225 = scmp.eq.s32.totalorder %s224, 0
      %s227 = sadd.s32 %s226, 1
      %s228 = scalar_select %p225, %s226, %s227
      %p231 = pneg %p225
      %p232 = scmp.eq.s32.totalorder %s30, 1
      %p233 = por %p231, %p232
      %p234 = scmp.ne.s32.totalorder %s226, %s229
      %p235 = scmp.eq.s32.totalorder %s30, 0
      %p236 = por %p234, %p235
      %p237 = scmp.ne.s32.totalorder %s226, %s229
      %p238 = scmp.eq.s32.totalorder %s35, 1
      %p239 = por %p237, %p238
      %p240 = scmp.ne.s32.totalorder %s229, %s230
      %p241 = scmp.eq.s32.totalorder %s35, 0
      %p242 = por %p240, %p241
      %p243 = scmp.ne.s32.totalorder %s229, %s230
      %p244 = scmp.eq.s32.totalorder %s36, 1
      %p245 = por %p243, %p244
      %p247 = scmp.ne.s32.totalorder %s230, %s246
      %p248 = scmp.eq.s32.totalorder %s36, 0
      %p249 = por %p247, %p248
      %s250 = ssub.s32 %s37, %s49
      %p251 = scmp.eq.s32.totalorder %s250, 0
      %s253 = sadd.s32 %s252, 1
      %s254 = scalar_select %p251, %s252, %s253
      %p257 = pneg %p251
      %p258 = scmp.eq.s32.totalorder %s30, 1
      %p259 = por %p257, %p258
      %p260 = scmp.ne.s32.totalorder %s252, %s255
      %p261 = scmp.eq.s32.totalorder %s30, 0
      %p262 = por %p260, %p261
      %p263 = scmp.ne.s32.totalorder %s252, %s255
      %p264 = scmp.eq.s32.totalorder %s35, 1
      %p265 = por %p263, %p264
      %p266 = scmp.ne.s32.totalorder %s255, %s256
      %p267 = scmp.eq.s32.totalorder %s35, 0
      %p268 = por %p266, %p267
      %p269 = scmp.ne.s32.totalorder %s255, %s256
      %p270 = scmp.eq.s32.totalorder %s36, 1
      %p271 = por %p269, %p270
      %p273 = scmp.ne.s32.totalorder %s256, %s272
      %p274 = scmp.eq.s32.totalorder %s36, 0
      %p275 = por %p273, %p274
      %s276 = ssub.s32 %s37, %s49
      %p277 = scmp.eq.s32.totalorder %s276, 0
      %s279 = sadd.s32 %s278, 1
      %s280 = scalar_select %p277, %s278, %s279
      %p283 = pneg %p277
      %p284 = scmp.eq.s32.totalorder %s30, 1
      %p285 = por %p283, %p284
      %p286 = scmp.ne.s32.totalorder %s278, %s281
      %p287 = scmp.eq.s32.totalorder %s30, 0
      %p288 = por %p286, %p287
      %p289 = scmp.ne.s32.totalorder %s278, %s281
      %p290 = scmp.eq.s32.totalorder %s35, 1
      %p291 = por %p289, %p290
      %p292 = scmp.ne.s32.totalorder %s281, %s282
      %p293 = scmp.eq.s32.totalorder %s35, 0
      %p294 = por %p292, %p293
      %p295 = scmp.ne.s32.totalorder %s281, %s282
      %p296 = scmp.eq.s32.totalorder %s36, 1
      %p297 = por %p295, %p296
      %p299 = scmp.ne.s32.totalorder %s282, %s298
      %p300 = scmp.eq.s32.totalorder %s36, 0
      %p301 = por %p299, %p300
      %p302 = scmp.le.s32.totalorder 1, %s30
      %p303 = scmp.lt.s32.totalorder %s30, 3
      %p304 = pnand %p302, %p303
      %p305 = pneg %p304
      // Predicated region
      $region9: #{tpu_custom_call.1} parent=5 // pred_check
        _
      $region10: #{tpu_custom_call.1} parent=5 // pred_check_branch
        %307 = sbr.rel (%p304) target = $region12
      $region11: #{tpu_custom_call.1} parent=5 // pred_region
        %s308 = ssub.s32 %s30, 1
      $region12: #{tpu_custom_call.1} parent=5 // pred_fallthru
        _
      %p309 = scmp.lt.s32.totalorder %s30, 2
      // Predicated region
      $region13: #{tpu_custom_call.1} parent=5 // pred_check
        %p310 = pneg %p309
      $region14: #{tpu_custom_call.1} parent=5 // pred_check_branch
        %312 = sbr.rel (%p310) target = $region16
      $region15: #{tpu_custom_call.1} parent=5 // pred_region
        // Predicated region
        $region17: #{tpu_custom_call.1} parent=15 // pred_check
          %p313 = pneg %p70
        $region18: #{tpu_custom_call.1} parent=15 // pred_check_branch
          %315 = sbr.rel (%p313) target = $region20
        $region19: #{tpu_custom_call.1} parent=15 // pred_region
          %s316 = sand.u32 %s60, 1
          %s317 = scalar_lea.sflag [#allocation6], %s316
          %s318 = sand.u32 %s60, 1
          %s319 = smul.addr %s318, 8
          %s320 = scalar_lea.vmem [#allocation5], %s319
          %s321 = smul.u32 %s38, 2
          %s322 = ssub.s32 0, %s321
          %s323 = smul.u32 %s37, %s322
          %s324 = sadd.s32 %s38, %s323
          %s325 = smul.u32 2, %s324
          %s327 = ssub.s32 128, 128
          %328 = vsyncadd %s317, %s327
          %s329 = smul.addr %s325, 64
          %s330 = scalar_lea.hbm %s0, %s329
          %s331 = sshll.u32 %s320, 4
          %s332 = int_to_ptr.vmem [resolvable:$true] %s331
          %337 = dma.hbm_to_vmem [thread:$0]  %s330, 128, %s332, %s317, 64, 64, 4
        $region20: #{tpu_custom_call.1} parent=15 // pred_fallthru
          _
        // Predicated region
        $region21: #{tpu_custom_call.1} parent=15 // pred_check
          %p338 = pneg %p96
        $region22: #{tpu_custom_call.1} parent=15 // pred_check_branch
          %340 = sbr.rel (%p338) target = $region24
        $region23: #{tpu_custom_call.1} parent=15 // pred_region
          %s341 = sand.u32 %s30, 1
          %s342 = scalar_lea.sflag [#allocation9], %s341
          %s343 = sand.u32 %s86, 1
          %s344 = smul.addr %s343, 16
          %s345 = scalar_lea.vmem [#allocation8], %s344
          %s347 = ssub.s32 256, 256
          %348 = vsyncadd %s342, %s347
          %s349 = smul.addr %s37, 4
          %s350 = smul.addr %s349, 64
          %s351 = scalar_lea.hbm %s1, %s350
          %s352 = sshll.u32 %s345, 4
          %s353 = int_to_ptr.vmem [resolvable:$true] %s352
          %358 = dma.hbm_to_vmem [thread:$0]  %s351, 256, %s353, %s342, 64, 64, 4
        $region24: #{tpu_custom_call.1} parent=15 // pred_fallthru
          _
        // Predicated region
        $region25: #{tpu_custom_call.1} parent=15 // pred_check
          %p359 = pneg %p122
        $region26: #{tpu_custom_call.1} parent=15 // pred_check_branch
          %361 = sbr.rel (%p359) target = $region28
        $region27: #{tpu_custom_call.1} parent=15 // pred_region
          %s362 = sand.u32 %s30, 1
          %s363 = scalar_lea.sflag [#allocation9], %s362
          %s364 = sand.u32 %s112, 1
          %s365 = smul.addr %s364, 8
          %s366 = scalar_lea.vmem [#allocation10], %s365
          %s368 = ssub.s32 128, 128
          %369 = vsyncadd %s363, %s368
          %s370 = smul.addr %s37, 2
          %s371 = smul.addr %s370, 64
          %s372 = scalar_lea.hbm %s2, %s371
          %s373 = sshll.u32 %s366, 4
          %s374 = int_to_ptr.vmem [resolvable:$true] %s373
          %379 = dma.hbm_to_vmem [thread:$0]  %s372, 128, %s374, %s363, 64, 64, 4
        $region28: #{tpu_custom_call.1} parent=15 // pred_fallthru
          _
        // Predicated region
        $region29: #{tpu_custom_call.1} parent=15 // pred_check
          %p380 = pneg %p148
        $region30: #{tpu_custom_call.1} parent=15 // pred_check_branch
          %382 = sbr.rel (%p380) target = $region32
        $region31: #{tpu_custom_call.1} parent=15 // pred_region
          %s383 = sand.u32 %s138, 1
          %s384 = scalar_lea.sflag [#allocation12], %s383
          %s385 = sand.u32 %s138, 1
          %s386 = scalar_lea.vmem [#allocation11], %s385
          %s388 = ssub.s32 16, 16
          %389 = vsyncadd %s384, %s388
          %s390 = smul.addr %s37, 16
          %s391 = scalar_lea.hbm %s3, %s390
          %s393 = sshll.u32 %s386, 4
          %s394 = int_to_ptr.vmem [resolvable:$true] %s393
          %396 = dma.hbm_to_vmem [thread:$0]  %s391, 16, %s394, %s384
        $region32: #{tpu_custom_call.1} parent=15 // pred_fallthru
          _
        // Predicated region
        $region33: #{tpu_custom_call.1} parent=15 // pred_check
          %p397 = pneg %p174
        $region34: #{tpu_custom_call.1} parent=15 // pred_check_branch
          %399 = sbr.rel (%p397) target = $region36
        $region35: #{tpu_custom_call.1} parent=15 // pred_region
          %p400 = scmp.lt.s32.totalorder %s37, 1
          %s401 = scalar_select %p400, %s37, 1
          %s402 = smul.addr %s401, 2
          %s403 = scalar_lea.vmem %s4, %s402
        $region36: #{tpu_custom_call.1} parent=15 // pred_fallthru
          _
        // Predicated region
        $region37: #{tpu_custom_call.1} parent=15 // pred_check
          %p404 = pneg %p200
        $region38: #{tpu_custom_call.1} parent=15 // pred_check_branch
          %406 = sbr.rel (%p404) target = $region40
        $region39: #{tpu_custom_call.1} parent=15 // pred_region
          %p407 = scmp.lt.s32.totalorder %s37, 1
          %s408 = scalar_select %p407, %s37, 1
          %s409 = smul.addr %s408, 2
          %s410 = scalar_lea.vmem %s5, %s409
        $region40: #{tpu_custom_call.1} parent=15 // pred_fallthru
          _
      $region16: #{tpu_custom_call.1} parent=5 // pred_fallthru
        _
      %p411 = scmp.le.s32.totalorder 1, %s30
      %p412 = scmp.lt.s32.totalorder %s30, 3
      %p413 = pnand %p411, %p412
      %p414 = pneg %p413
      // Predicated region
      $region41: #{tpu_custom_call.1} parent=5 // pred_check
        _
      $region42: #{tpu_custom_call.1} parent=5 // pred_check_branch
        %416 = sbr.rel (%p413) target = $region44
      $region43: #{tpu_custom_call.1} parent=5 // pred_region
        %s417 = ssub.s32 %s30, 1
        %s418 = sand.u32 %s63, 1
        %s419 = scalar_lea.sflag [#allocation6], %s418
        %s420 = sand.u32 %s63, 1
        %s421 = smul.addr %s420, 8
        %s422 = scalar_lea.vmem [#allocation5], %s421
        // Predicated region
        $region45: #{tpu_custom_call.1} parent=43 // pred_check
          %p423 = pneg %p76
        $region46: #{tpu_custom_call.1} parent=43 // pred_check_branch
          %425 = sbr.rel (%p423) target = $region48
        $region47: #{tpu_custom_call.1} parent=43 // pred_region
          %426 = dma.done %s419, 128
        $region48: #{tpu_custom_call.1} parent=43 // pred_fallthru
          _
        %s427 = sand.u32 %s35, 1
        %s428 = scalar_lea.sflag [#allocation9], %s427
        %s429 = sand.u32 %s89, 1
        %s430 = smul.addr %s429, 16
        %s431 = scalar_lea.vmem [#allocation8], %s430
        // Predicated region
        $region49: #{tpu_custom_call.1} parent=43 // pred_check
          %p432 = pneg %p102
        $region50: #{tpu_custom_call.1} parent=43 // pred_check_branch
          %434 = sbr.rel (%p432) target = $region52
        $region51: #{tpu_custom_call.1} parent=43 // pred_region
          %435 = dma.done %s428, 256
        $region52: #{tpu_custom_call.1} parent=43 // pred_fallthru
          _
        %s436 = sand.u32 %s35, 1
        %s437 = scalar_lea.sflag [#allocation9], %s436
        %s438 = sand.u32 %s115, 1
        %s439 = smul.addr %s438, 8
        %s440 = scalar_lea.vmem [#allocation10], %s439
        // Predicated region
        $region53: #{tpu_custom_call.1} parent=43 // pred_check
          %p441 = pneg %p128
        $region54: #{tpu_custom_call.1} parent=43 // pred_check_branch
          %443 = sbr.rel (%p441) target = $region56
        $region55: #{tpu_custom_call.1} parent=43 // pred_region
          %444 = dma.done %s437, 128
        $region56: #{tpu_custom_call.1} parent=43 // pred_fallthru
          _
        %s445 = sand.u32 %s141, 1
        %s446 = scalar_lea.sflag [#allocation12], %s445
        %s447 = sand.u32 %s141, 1
        %s448 = scalar_lea.vmem [#allocation11], %s447
        // Predicated region
        $region57: #{tpu_custom_call.1} parent=43 // pred_check
          %p449 = pneg %p154
        $region58: #{tpu_custom_call.1} parent=43 // pred_check_branch
          %451 = sbr.rel (%p449) target = $region60
        $region59: #{tpu_custom_call.1} parent=43 // pred_region
          %452 = dma.done %s446, 16
        $region60: #{tpu_custom_call.1} parent=43 // pred_fallthru
          _
        %s453 = sand.u32 %s63, 1
        %s454 = scalar_lea.sflag [#allocation6], %s453
        %s455 = sand.u32 %s63, 1
        %s456 = smul.addr %s455, 8
        %s457 = scalar_lea.vmem [#allocation5], %s456
        %p458 = pneg %p76
        %p459 = pneg %p73
        %s460 = sand.u32 %s35, 1
        %s461 = scalar_lea.sflag [#allocation9], %s460
        %s462 = sand.u32 %s89, 1
        %s463 = smul.addr %s462, 16
        %s464 = scalar_lea.vmem [#allocation8], %s463
        %p465 = pneg %p102
        %p466 = pneg %p99
        %s467 = sand.u32 %s35, 1
        %s468 = scalar_lea.sflag [#allocation9], %s467
        %s469 = sand.u32 %s115, 1
        %s470 = smul.addr %s469, 8
        %s471 = scalar_lea.vmem [#allocation10], %s470
        %p472 = pneg %p128
        %p473 = pneg %p125
        %s474 = sand.u32 %s141, 1
        %s475 = scalar_lea.sflag [#allocation12], %s474
        %s476 = sand.u32 %s141, 1
        %s477 = scalar_lea.vmem [#allocation11], %s476
        %p478 = pneg %p154
        %p479 = pneg %p151
        %p480 = scmp.lt.s32.totalorder %s39, 1
        %s481 = scalar_select %p480, %s39, 1
        %s482 = smul.addr %s481, 2
        %s483 = scalar_lea.vmem %s4, %s482
        %p484 = pneg %p180
        %p485 = pneg %p177
        %p486 = scmp.lt.s32.totalorder %s39, 1
        %s487 = scalar_select %p486, %s39, 1
        %s488 = smul.addr %s487, 2
        %s489 = scalar_lea.vmem %s5, %s488
        %p490 = pneg %p206
        %p491 = pneg %p203
        %p492 = pneg %p242
        %p493 = pneg %p239
        %s494 = sand.u32 %s229, 1
        %s495 = scalar_lea.sflag [#allocation7], %s494
        %s496 = sand.u32 %s229, 1
        %s497 = smul.addr %s496, 8
        %s498 = scalar_lea.vmem [#allocation13], %s497
        %p499 = pneg %p268
        %p500 = pneg %p265
        %s501 = sand.u32 %s35, 1
        %s502 = scalar_lea.sflag [#allocation15], %s501
        %s503 = sand.u32 %s255, 1
        %s504 = smul.addr %s503, 2
        %s505 = scalar_lea.vmem [#allocation14], %s504
        %p506 = pneg %p294
        %p507 = pneg %p291
        %s508 = sand.u32 %s35, 1
        %s509 = scalar_lea.sflag [#allocation15], %s508
        %s510 = sand.u32 %s281, 1
        %s511 = smul.addr %s510, 2
        %s512 = scalar_lea.vmem [#allocation16], %s511
        %s513 = smul.u32 %s40, 2
        %s514 = ssub.s32 0, %s513
        %s515 = smul.u32 %s39, %s514
        %s516 = sadd.s32 %s40, %s515
        %s517 = smul.u32 2, %s516
        %p518 = scmp.lt.s32.totalorder %s39, 1
        %s519 = scalar_select %p518, %s39, 1
        %s520 = smul.addr %s519, 2
        %s521 = scalar_lea.vmem %s4, %s520
        %p522 = scmp.lt.s32.totalorder %s39, 1
        %s523 = scalar_select %p522, %s39, 1
        %s524 = smul.addr %s523, 2
        %s525 = scalar_lea.vmem %s5, %s524
        %s526 = smul.u32 %s40, 2
        %s527 = ssub.s32 0, %s526
        %s528 = smul.u32 %s39, %s527
        %s529 = sadd.s32 %s40, %s528
        %s530 = smul.u32 8, %s529
        %p532 = scmp.eq.s32.totalorder %s40, 0
        // Predicated region
        $region61: #{tpu_custom_call.1} parent=43 // pred_check
          %p533 = pneg %p532
        $region62: #{tpu_custom_call.1} parent=43 // pred_check_branch
          %535 = sbr.rel (%p533) target = $region64
        $region63: #{tpu_custom_call.1} parent=43 // pred_region
          %v536 = vld [vmem:[%s521] sm:$0x3]
          %vm537 = vcmask 123904
          %538 = vst.msk [vmem:[#allocation2] sm:$0x3] %vm537, %v536
          %v539 = vld [vmem:[%s525] sm:$0x3]
          %540 = vst.msk [vmem:[#allocation3] sm:$0x3] %vm537, %v539
        $region64: #{tpu_custom_call.1} parent=43 // pred_fallthru
          _
        %v541 = vld [vmem:[%s422] sm:$0xf]
        %v542 = vld [vmem:[%s422 + $0x4] sm:$0xf]
        %v543 = vld [vmem:[%s431] sm:$0xf]
        %v544 = vld [vmem:[%s431 + $0x4] sm:$0xf]
        %v545 = vld [vmem:[%s431 + $0x8] sm:$0xf]
        %v546 = vld [vmem:[%s431 + $0xc] sm:$0xf]
        %v547 = vld [vmem:[%s448] sm:$0x1]
        %v549 = vlaneseq
        %v550 = vshrl.u32 %v549, 7
        %v551 = vsub.s32 0, %v550
        %v552 = vrot.slane %v547, %v551
        %v556 = vunpack.c.l.b16 %v541
        %v557 = vunpack.c.l.b16 %v542
        %v558 = vpack.c.b16 %v557, %v556
        %v563 = vunpack.c.l.b16 %v543
        %v564 = vunpack.c.l.b16 %v544
        %v565 = vunpack.c.l.b16 %v545
        %v566 = vunpack.c.l.b16 %v546
        %v567 = vpack.c.b16 %v564, %v563
        %v568 = vpack.c.b16 %v566, %v565
        %vm571 = vcmask 261120
        %v573 = vsel %vm571, %v558, 0
        %575 = vmatprep.subr.bf16.mxu0 0
        %576 = vmatpush1.bf16.msra.mxu0 0
        %577 = vmatprep.subr.bf16.mxu0 0
        %578 = vmatpush1.bf16.msra.mxu0 0
        %579 = vmatprep.subr.bf16.mxu0 0
        %580 = vmatpush1.bf16.msra.mxu0 0
        %581 = vmatprep.subr.bf16.mxu0 0
        %582 = vmatpush1.bf16.msra.mxu0 0
        %583 = vmatprep.subr.bf16.mxu0 0
        %584 = vmatpush1.bf16.msra.mxu0 0
        %585 = vmatprep.subr.bf16.mxu0 0
        %586 = vmatpush1.bf16.msra.mxu0 0
        %587 = vmatprep.subr.bf16.mxu0 0
        %588 = vmatpush1.bf16.msra.mxu0 %v568
        %589 = vmatprep.subr.bf16.mxu0 0
        %590 = vmatpush1.bf16.msra.mxu0 %v567
        %591 = vmatprep.subr.bf16.mxu0 0
        %592 = vmatpush2.bf16.msra.mxu0 0
        %593 = vmatprep.subr.bf16.mxu0 0
        %594 = vmatpush2.bf16.msra.mxu0 0
        %595 = vmatprep.subr.bf16.mxu0 0
        %596 = vmatpush2.bf16.msra.mxu0 0
        %597 = vmatprep.subr.bf16.mxu0 0
        %598 = vmatpush2.bf16.msra.mxu0 0
        %599 = vmatprep.subr.bf16.mxu0 0
        %600 = vmatpush2.bf16.msra.mxu0 0
        %601 = vmatprep.subr.bf16.mxu0 0
        %602 = vmatpush2.bf16.msra.mxu0 0
        %603 = vmatprep.subr.bf16.mxu0 0
        %604 = vmatpush2.bf16.msra.mxu0 0
        %605 = vmatprep.subr.bf16.mxu0 0
        %606 = vmatpush2.bf16.msra.mxu0 0
        %607 = vmatprep.mubr.bf16.mxu0 0
        %608 = vmatmul.mubr.bf16.gmra.mxu0 %v573
        %v609 = vpop.f32.mrf.mxu0
        %v610 = vadd.f32 %v552, %v609
        %v611 = vpop.f32.mrf.mxu0
        %v612 = vpop.f32.mrf.mxu0
        %v613 = vadd.f32 %v552, %v612
        %v614 = vpop.f32.mrf.mxu0
        %615 = vdwg.mxu0
        %vm616 = vcmask 523264
        %617 = vst.msk [vmem:[#allocation4] sm:$0xff] %vm616, %v610
        %618 = vst.msk [vmem:[#allocation4 + $0x8] sm:$0xff] %vm616, %v613
        %v619 = vld [vmem:[%s440] sm:$0xf]
        %v620 = vld [vmem:[%s440 + $0x4] sm:$0xf]
        %v621 = vld [vmem:[#allocation2] sm:$0x3]
        %v622 = vld [vmem:[#allocation3] sm:$0x3]
        %s623 = smul.u32 %s39, 7
        %s624 = smul.u32 %s39, 14
        %v625 = vpack.c.bf16 %v621, %v621
        %s626 = scalar_lea.vmem [#allocation4], %s624
        %v627 = vld [vmem:[%s626] sm:$0x3]
        %v630 = vunpack.c.l.b16 %v619
        %v631 = vunpack.c.l.b16 %v620
        %v632 = vpack.c.b16 %v631, %v630
        %vm634 = vcmask 130048
        %v636 = vsel %vm634, %v625, 0
        %638 = vmatprep.subr.bf16.mxu0 0
        %639 = vmatpush1.bf16.msra.mxu0 0
        %640 = vmatprep.subr.bf16.mxu0 0
        %641 = vmatpush1.bf16.msra.mxu0 0
        %642 = vmatprep.subr.bf16.mxu0 0
        %643 = vmatpush1.bf16.msra.mxu0 0
        %644 = vmatprep.subr.bf16.mxu0 0
        %645 = vmatpush1.bf16.msra.mxu0 0
        %646 = vmatprep.subr.bf16.mxu0 0
        %647 = vmatpush1.bf16.msra.mxu0 0
        %648 = vmatprep.subr.bf16.mxu0 0
        %649 = vmatpush1.bf16.msra.mxu0 0
        %650 = vmatprep.subr.bf16.mxu0 0
        %651 = vmatpush1.bf16.msra.mxu0 0
        %652 = vmatprep.subr.bf16.mxu0 0
        %653 = vmatpush1.bf16.msra.mxu0 %v632
        %654 = vmatprep.subr.bf16.mxu0 0
        %655 = vmatpush2.bf16.msra.mxu0 0
        %656 = vmatprep.subr.bf16.mxu0 0
        %657 = vmatpush2.bf16.msra.mxu0 0
        %658 = vmatprep.subr.bf16.mxu0 0
        %659 = vmatpush2.bf16.msra.mxu0 0
        %660 = vmatprep.subr.bf16.mxu0 0
        %661 = vmatpush2.bf16.msra.mxu0 0
        %662 = vmatprep.subr.bf16.mxu0 0
        %663 = vmatpush2.bf16.msra.mxu0 0
        %664 = vmatprep.subr.bf16.mxu0 0
        %665 = vmatpush2.bf16.msra.mxu0 0
        %666 = vmatprep.subr.bf16.mxu0 0
        %667 = vmatpush2.bf16.msra.mxu0 0
        %668 = vmatprep.subr.bf16.mxu0 0
        %669 = vmatpush2.bf16.msra.mxu0 0
        %670 = vmatprep.mubr.bf16.mxu0 0
        %671 = vmatmul.mubr.bf16.gmra.mxu0 %v636
        %v672 = vpop.f32.mrf.mxu0
        %v673 = vadd.f32 %v627, %v672
        %v674 = vpop.f32.mrf.mxu0
        %v675 = vpop.f32.mrf.mxu0
        %v676 = vpop.f32.mrf.mxu0
        %677 = vdwg.mxu0
        %v678 = vsub.f32 0.0, %v673
        %v679 = vmul.f32 %v678, 1.442695
        %v680 = vpow.pop %v679
        %v681 = vadd.f32 %v680, 1.0
        %v682 = vrcp.pop %v681
        %v683 = vmul.f32 1.0, %v682
        %v684 = vtanh.pop %v673
        %686 = vrot.lane.b32.xlu0 %v622, 16
        %v687 = vpop.permute.xlu0 %686
        %v689 = vmul.f32 %v683, %v687
        %691 = vrot.lane.b32.xlu0 %v684, 96
        %v692 = vpop.permute.xlu0 %691
        %v694 = vmul.f32 %v683, %v692
        %696 = vrot.lane.b32.xlu0 %v694, 16
        %v697 = vpop.permute.xlu0 %696
        %v699 = vadd.f32 %v689, %v697
        %v700 = vtanh.pop %v699
        %702 = vrot.lane.b32.xlu0 %v700, 32
        %v703 = vpop.permute.xlu0 %702
        %v705 = vmul.f32 %v683, %v703
        %v706 = vpack.c.bf16 %v705, %v705
        %v709 = vunpack.c.l.s4 1966171168
        %v710 = vunpack.c.0.s8 %v709
        %v711 = vlaneseq
        %v712 = vshrl.u32 %v711, 7
        %v713 = vsub.s32 %v710, %v712
        %v714 = vrot.slane %v706, %v713
        %v716 = vunpack.c.l.s4 1966171168
        %v717 = vunpack.c.0.s8 %v716
        %v718 = vlaneseq
        %v719 = vshrl.u32 %v718, 7
        %v720 = vsub.s32 %v717, %v719
        %v721 = vrot.slane %v714, %v720
        %722 = vrot.lane.b32.xlu0 %v721, 80
        %v723 = vpop.permute.xlu0 %722
        %s725 = scalar_lea.vmem %s498, %s623 [#allocation13]
        %vm726 = vcmask 122880
        %727 = vst.msk [vmem:[%s725] sm:$0x1] %vm726, %v723
        %s728 = smul.u32 %s39, 5
        %s729 = sadd.s32 %s728, 1
        %s730 = smul.u32 %s729, 2
        %s731 = scalar_lea.vmem [#allocation4], %s730
        %v732 = vld [vmem:[%s731] sm:$0x3]
        %733 = vrot.lane.b32.xlu0 %v706, 80
        %v734 = vpop.permute.xlu0 %733
        %v736 = vsel %vm634, %v734, 0
        %738 = vmatprep.subr.bf16.mxu0 0
        %739 = vmatpush1.bf16.msra.mxu0 0
        %740 = vmatprep.subr.bf16.mxu0 0
        %741 = vmatpush1.bf16.msra.mxu0 0
        %742 = vmatprep.subr.bf16.mxu0 0
        %743 = vmatpush1.bf16.msra.mxu0 0
        %744 = vmatprep.subr.bf16.mxu0 0
        %745 = vmatpush1.bf16.msra.mxu0 0
        %746 = vmatprep.subr.bf16.mxu0 0
        %747 = vmatpush1.bf16.msra.mxu0 0
        %748 = vmatprep.subr.bf16.mxu0 0
        %749 = vmatpush1.bf16.msra.mxu0 0
        %750 = vmatprep.subr.bf16.mxu0 0
        %751 = vmatpush1.bf16.msra.mxu0 0
        %752 = vmatprep.subr.bf16.mxu0 0
        %753 = vmatpush1.bf16.msra.mxu0 %v632
        %754 = vmatprep.subr.bf16.mxu0 0
        %755 = vmatpush2.bf16.msra.mxu0 0
        %756 = vmatprep.subr.bf16.mxu0 0
        %757 = vmatpush2.bf16.msra.mxu0 0
        %758 = vmatprep.subr.bf16.mxu0 0
        %759 = vmatpush2.bf16.msra.mxu0 0
        %760 = vmatprep.subr.bf16.mxu0 0
        %761 = vmatpush2.bf16.msra.mxu0 0
        %762 = vmatprep.subr.bf16.mxu0 0
        %763 = vmatpush2.bf16.msra.mxu0 0
        %764 = vmatprep.subr.bf16.mxu0 0
        %765 = vmatpush2.bf16.msra.mxu0 0
        %766 = vmatprep.subr.bf16.mxu0 0
        %767 = vmatpush2.bf16.msra.mxu0 0
        %768 = vmatprep.subr.bf16.mxu0 0
        %769 = vmatpush2.bf16.msra.mxu0 0
        %770 = vmatprep.mubr.bf16.mxu0 0
        %771 = vmatmul.mubr.bf16.gmra.mxu0 %v736
        %v772 = vpop.f32.mrf.mxu0
        %v773 = vadd.f32 %v732, %v772
        %v774 = vpop.f32.mrf.mxu0
        %v775 = vpop.f32.mrf.mxu0
        %v776 = vpop.f32.mrf.mxu0
        %777 = vdwg.mxu0
        %v778 = vsub.f32 0.0, %v773
        %v779 = vmul.f32 %v778, 1.442695
        %v780 = vpow.pop %v779
        %v781 = vadd.f32 %v780, 1.0
        %v782 = vrcp.pop %v781
        %v783 = vmul.f32 1.0, %v782
        %v784 = vtanh.pop %v773
        %v785 = vmul.f32 %v783, %v699
        %787 = vrot.lane.b32.xlu0 %v784, 96
        %v788 = vpop.permute.xlu0 %787
        %v790 = vmul.f32 %v783, %v788
        %792 = vrot.lane.b32.xlu0 %v790, 16
        %v793 = vpop.permute.xlu0 %792
        %v795 = vadd.f32 %v785, %v793
        %v796 = vtanh.pop %v795
        %798 = vrot.lane.b32.xlu0 %v796, 32
        %v799 = vpop.permute.xlu0 %798
        %v801 = vmul.f32 %v783, %v799
        %v802 = vpack.c.bf16 %v801, %v801
        %v805 = vunpack.c.l.s4 1966171168
        %v806 = vunpack.c.0.s8 %v805
        %v807 = vlaneseq
        %v808 = vshrl.u32 %v807, 7
        %v809 = vsub.s32 %v806, %v808
        %v810 = vrot.slane %v802, %v809
        %v812 = vunpack.c.l.s4 1966171168
        %v813 = vunpack.c.0.s8 %v812
        %v814 = vlaneseq
        %v815 = vshrl.u32 %v814, 7
        %v816 = vsub.s32 %v813, %v815
        %v817 = vrot.slane %v810, %v816
        %818 = vrot.lane.b32.xlu0 %v817, 80
        %v819 = vpop.permute.xlu0 %818
        %s821 = scalar_lea.vmem %s498, %s729 [#allocation13]
        %822 = vst.msk [vmem:[%s821] sm:$0x1] %vm726, %v819
        %s823 = smul.u32 %s39, 3
        %s824 = sadd.s32 %s823, 2
        %s825 = smul.u32 %s824, 2
        %s826 = scalar_lea.vmem [#allocation4], %s825
        %v827 = vld [vmem:[%s826] sm:$0x3]
        %828 = vrot.lane.b32.xlu0 %v802, 80
        %v829 = vpop.permute.xlu0 %828
        %v831 = vsel %vm634, %v829, 0
        %833 = vmatprep.subr.bf16.mxu0 0
        %834 = vmatpush1.bf16.msra.mxu0 0
        %835 = vmatprep.subr.bf16.mxu0 0
        %836 = vmatpush1.bf16.msra.mxu0 0
        %837 = vmatprep.subr.bf16.mxu0 0
        %838 = vmatpush1.bf16.msra.mxu0 0
        %839 = vmatprep.subr.bf16.mxu0 0
        %840 = vmatpush1.bf16.msra.mxu0 0
        %841 = vmatprep.subr.bf16.mxu0 0
        %842 = vmatpush1.bf16.msra.mxu0 0
        %843 = vmatprep.subr.bf16.mxu0 0
        %844 = vmatpush1.bf16.msra.mxu0 0
        %845 = vmatprep.subr.bf16.mxu0 0
        %846 = vmatpush1.bf16.msra.mxu0 0
        %847 = vmatprep.subr.bf16.mxu0 0
        %848 = vmatpush1.bf16.msra.mxu0 %v632
        %849 = vmatprep.subr.bf16.mxu0 0
        %850 = vmatpush2.bf16.msra.mxu0 0
        %851 = vmatprep.subr.bf16.mxu0 0
        %852 = vmatpush2.bf16.msra.mxu0 0
        %853 = vmatprep.subr.bf16.mxu0 0
        %854 = vmatpush2.bf16.msra.mxu0 0
        %855 = vmatprep.subr.bf16.mxu0 0
        %856 = vmatpush2.bf16.msra.mxu0 0
        %857 = vmatprep.subr.bf16.mxu0 0
        %858 = vmatpush2.bf16.msra.mxu0 0
        %859 = vmatprep.subr.bf16.mxu0 0
        %860 = vmatpush2.bf16.msra.mxu0 0
        %861 = vmatprep.subr.bf16.mxu0 0
        %862 = vmatpush2.bf16.msra.mxu0 0
        %863 = vmatprep.subr.bf16.mxu0 0
        %864 = vmatpush2.bf16.msra.mxu0 0
        %865 = vmatprep.mubr.bf16.mxu0 0
        %866 = vmatmul.mubr.bf16.gmra.mxu0 %v831
        %v867 = vpop.f32.mrf.mxu0
        %v868 = vadd.f32 %v827, %v867
        %v869 = vpop.f32.mrf.mxu0
        %v870 = vpop.f32.mrf.mxu0
        %v871 = vpop.f32.mrf.mxu0
        %872 = vdwg.mxu0
        %v873 = vsub.f32 0.0, %v868
        %v874 = vmul.f32 %v873, 1.442695
        %v875 = vpow.pop %v874
        %v876 = vadd.f32 %v875, 1.0
        %v877 = vrcp.pop %v876
        %v878 = vmul.f32 1.0, %v877
        %v879 = vtanh.pop %v868
        %v880 = vmul.f32 %v878, %v795
        %882 = vrot.lane.b32.xlu0 %v879, 96
        %v883 = vpop.permute.xlu0 %882
        %v885 = vmul.f32 %v878, %v883
        %887 = vrot.lane.b32.xlu0 %v885, 16
        %v888 = vpop.permute.xlu0 %887
        %v890 = vadd.f32 %v880, %v888
        %v891 = vtanh.pop %v890
        %893 = vrot.lane.b32.xlu0 %v891, 32
        %v894 = vpop.permute.xlu0 %893
        %v896 = vmul.f32 %v878, %v894
        %v897 = vpack.c.bf16 %v896, %v896
        %v900 = vunpack.c.l.s4 1966171168
        %v901 = vunpack.c.0.s8 %v900
        %v902 = vlaneseq
        %v903 = vshrl.u32 %v902, 7
        %v904 = vsub.s32 %v901, %v903
        %v905 = vrot.slane %v897, %v904
        %v907 = vunpack.c.l.s4 1966171168
        %v908 = vunpack.c.0.s8 %v907
        %v909 = vlaneseq
        %v910 = vshrl.u32 %v909, 7
        %v911 = vsub.s32 %v908, %v910
        %v912 = vrot.slane %v905, %v911
        %913 = vrot.lane.b32.xlu0 %v912, 80
        %v914 = vpop.permute.xlu0 %913
        %s916 = scalar_lea.vmem %s498, %s824 [#allocation13]
        %917 = vst.msk [vmem:[%s916] sm:$0x1] %vm726, %v914
        %s918 = sadd.s32 %s39, 3
        %s919 = smul.u32 %s918, 2
        %s920 = scalar_lea.vmem [#allocation4], %s919
        %v921 = vld [vmem:[%s920] sm:$0x3]
        %922 = vrot.lane.b32.xlu0 %v897, 80
        %v923 = vpop.permute.xlu0 %922
        %v925 = vsel %vm634, %v923, 0
        %927 = vmatprep.subr.bf16.mxu0 0
        %928 = vmatpush1.bf16.msra.mxu0 0
        %929 = vmatprep.subr.bf16.mxu0 0
        %930 = vmatpush1.bf16.msra.mxu0 0
        %931 = vmatprep.subr.bf16.mxu0 0
        %932 = vmatpush1.bf16.msra.mxu0 0
        %933 = vmatprep.subr.bf16.mxu0 0
        %934 = vmatpush1.bf16.msra.mxu0 0
        %935 = vmatprep.subr.bf16.mxu0 0
        %936 = vmatpush1.bf16.msra.mxu0 0
        %937 = vmatprep.subr.bf16.mxu0 0
        %938 = vmatpush1.bf16.msra.mxu0 0
        %939 = vmatprep.subr.bf16.mxu0 0
        %940 = vmatpush1.bf16.msra.mxu0 0
        %941 = vmatprep.subr.bf16.mxu0 0
        %942 = vmatpush1.bf16.msra.mxu0 %v632
        %943 = vmatprep.subr.bf16.mxu0 0
        %944 = vmatpush2.bf16.msra.mxu0 0
        %945 = vmatprep.subr.bf16.mxu0 0
        %946 = vmatpush2.bf16.msra.mxu0 0
        %947 = vmatprep.subr.bf16.mxu0 0
        %948 = vmatpush2.bf16.msra.mxu0 0
        %949 = vmatprep.subr.bf16.mxu0 0
        %950 = vmatpush2.bf16.msra.mxu0 0
        %951 = vmatprep.subr.bf16.mxu0 0
        %952 = vmatpush2.bf16.msra.mxu0 0
        %953 = vmatprep.subr.bf16.mxu0 0
        %954 = vmatpush2.bf16.msra.mxu0 0
        %955 = vmatprep.subr.bf16.mxu0 0
        %956 = vmatpush2.bf16.msra.mxu0 0
        %957 = vmatprep.subr.bf16.mxu0 0
        %958 = vmatpush2.bf16.msra.mxu0 0
        %959 = vmatprep.mubr.bf16.mxu0 0
        %960 = vmatmul.mubr.bf16.gmra.mxu0 %v925
        %v961 = vpop.f32.mrf.mxu0
        %v962 = vadd.f32 %v921, %v961
        %v963 = vpop.f32.mrf.mxu0
        %v964 = vpop.f32.mrf.mxu0
        %v965 = vpop.f32.mrf.mxu0
        %966 = vdwg.mxu0
        %v967 = vsub.f32 0.0, %v962
        %v968 = vmul.f32 %v967, 1.442695
        %v969 = vpow.pop %v968
        %v970 = vadd.f32 %v969, 1.0
        %v971 = vrcp.pop %v970
        %v972 = vmul.f32 1.0, %v971
        %v973 = vtanh.pop %v962
        %v974 = vmul.f32 %v972, %v890
        %976 = vrot.lane.b32.xlu0 %v973, 96
        %v977 = vpop.permute.xlu0 %976
        %v979 = vmul.f32 %v972, %v977
        %981 = vrot.lane.b32.xlu0 %v979, 16
        %v982 = vpop.permute.xlu0 %981
        %v984 = vadd.f32 %v974, %v982
        %v985 = vtanh.pop %v984
        %987 = vrot.lane.b32.xlu0 %v985, 32
        %v988 = vpop.permute.xlu0 %987
        %v990 = vmul.f32 %v972, %v988
        %v991 = vpack.c.bf16 %v990, %v990
        %v994 = vunpack.c.l.s4 1966171168
        %v995 = vunpack.c.0.s8 %v994
        %v996 = vlaneseq
        %v997 = vshrl.u32 %v996, 7
        %v998 = vsub.s32 %v995, %v997
        %v999 = vrot.slane %v991, %v998
        %v1001 = vunpack.c.l.s4 1966171168
        %v1002 = vunpack.c.0.s8 %v1001
        %v1003 = vlaneseq
        %v1004 = vshrl.u32 %v1003, 7
        %v1005 = vsub.s32 %v1002, %v1004
        %v1006 = vrot.slane %v999, %v1005
        %1007 = vrot.lane.b32.xlu0 %v1006, 80
        %v1008 = vpop.permute.xlu0 %1007
        %s1010 = scalar_lea.vmem %s498, %s918 [#allocation13]
        %1011 = vst.msk [vmem:[%s1010] sm:$0x1] %vm726, %v1008
        %s1012 = ssub.s32 4, %s39
        %s1013 = smul.u32 %s1012, 2
        %s1014 = scalar_lea.vmem [#allocation4], %s1013
        %v1015 = vld [vmem:[%s1014] sm:$0x3]
        %1016 = vrot.lane.b32.xlu0 %v991, 80
        %v1017 = vpop.permute.xlu0 %1016
        %v1019 = vsel %vm634, %v1017, 0
        %1021 = vmatprep.subr.bf16.mxu0 0
        %1022 = vmatpush1.bf16.msra.mxu0 0
        %1023 = vmatprep.subr.bf16.mxu0 0
        %1024 = vmatpush1.bf16.msra.mxu0 0
        %1025 = vmatprep.subr.bf16.mxu0 0
        %1026 = vmatpush1.bf16.msra.mxu0 0
        %1027 = vmatprep.subr.bf16.mxu0 0
        %1028 = vmatpush1.bf16.msra.mxu0 0
        %1029 = vmatprep.subr.bf16.mxu0 0
        %1030 = vmatpush1.bf16.msra.mxu0 0
        %1031 = vmatprep.subr.bf16.mxu0 0
        %1032 = vmatpush1.bf16.msra.mxu0 0
        %1033 = vmatprep.subr.bf16.mxu0 0
        %1034 = vmatpush1.bf16.msra.mxu0 0
        %1035 = vmatprep.subr.bf16.mxu0 0
        %1036 = vmatpush1.bf16.msra.mxu0 %v632
        %1037 = vmatprep.subr.bf16.mxu0 0
        %1038 = vmatpush2.bf16.msra.mxu0 0
        %1039 = vmatprep.subr.bf16.mxu0 0
        %1040 = vmatpush2.bf16.msra.mxu0 0
        %1041 = vmatprep.subr.bf16.mxu0 0
        %1042 = vmatpush2.bf16.msra.mxu0 0
        %1043 = vmatprep.subr.bf16.mxu0 0
        %1044 = vmatpush2.bf16.msra.mxu0 0
        %1045 = vmatprep.subr.bf16.mxu0 0
        %1046 = vmatpush2.bf16.msra.mxu0 0
        %1047 = vmatprep.subr.bf16.mxu0 0
        %1048 = vmatpush2.bf16.msra.mxu0 0
        %1049 = vmatprep.subr.bf16.mxu0 0
        %1050 = vmatpush2.bf16.msra.mxu0 0
        %1051 = vmatprep.subr.bf16.mxu0 0
        %1052 = vmatpush2.bf16.msra.mxu0 0
        %1053 = vmatprep.mubr.bf16.mxu0 0
        %1054 = vmatmul.mubr.bf16.gmra.mxu0 %v1019
        %v1055 = vpop.f32.mrf.mxu0
        %v1056 = vadd.f32 %v1015, %v1055
        %v1057 = vpop.f32.mrf.mxu0
        %v1058 = vpop.f32.mrf.mxu0
        %v1059 = vpop.f32.mrf.mxu0
        %1060 = vdwg.mxu0
        %v1061 = vsub.f32 0.0, %v1056
        %v1062 = vmul.f32 %v1061, 1.442695
        %v1063 = vpow.pop %v1062
        %v1064 = vadd.f32 %v1063, 1.0
        %v1065 = vrcp.pop %v1064
        %v1066 = vmul.f32 1.0, %v1065
        %v1067 = vtanh.pop %v1056
        %v1068 = vmul.f32 %v1066, %v984
        %1070 = vrot.lane.b32.xlu0 %v1067, 96
        %v1071 = vpop.permute.xlu0 %1070
        %v1073 = vmul.f32 %v1066, %v1071
        %1075 = vrot.lane.b32.xlu0 %v1073, 16
        %v1076 = vpop.permute.xlu0 %1075
        %v1078 = vadd.f32 %v1068, %v1076
        %v1079 = vtanh.pop %v1078
        %1081 = vrot.lane.b32.xlu0 %v1079, 32
        %v1082 = vpop.permute.xlu0 %1081
        %v1084 = vmul.f32 %v1066, %v1082
        %v1085 = vpack.c.bf16 %v1084, %v1084
        %v1088 = vunpack.c.l.s4 1966171168
        %v1089 = vunpack.c.0.s8 %v1088
        %v1090 = vlaneseq
        %v1091 = vshrl.u32 %v1090, 7
        %v1092 = vsub.s32 %v1089, %v1091
        %v1093 = vrot.slane %v1085, %v1092
        %v1095 = vunpack.c.l.s4 1966171168
        %v1096 = vunpack.c.0.s8 %v1095
        %v1097 = vlaneseq
        %v1098 = vshrl.u32 %v1097, 7
        %v1099 = vsub.s32 %v1096, %v1098
        %v1100 = vrot.slane %v1093, %v1099
        %1101 = vrot.lane.b32.xlu0 %v1100, 80
        %v1102 = vpop.permute.xlu0 %1101
        %s1104 = scalar_lea.vmem %s498, %s1012 [#allocation13]
        %1105 = vst.msk [vmem:[%s1104] sm:$0x1] %vm726, %v1102
        %s1106 = smul.u32 %s39, 4294967293
        %s1107 = sadd.s32 %s1106, 5
        %s1108 = smul.u32 %s1107, 2
        %s1109 = scalar_lea.vmem [#allocation4], %s1108
        %v1110 = vld [vmem:[%s1109] sm:$0x3]
        %1111 = vrot.lane.b32.xlu0 %v1085, 80
        %v1112 = vpop.permute.xlu0 %1111
        %v1114 = vsel %vm634, %v1112, 0
        %1116 = vmatprep.subr.bf16.mxu0 0
        %1117 = vmatpush1.bf16.msra.mxu0 0
        %1118 = vmatprep.subr.bf16.mxu0 0
        %1119 = vmatpush1.bf16.msra.mxu0 0
        %1120 = vmatprep.subr.bf16.mxu0 0
        %1121 = vmatpush1.bf16.msra.mxu0 0
        %1122 = vmatprep.subr.bf16.mxu0 0
        %1123 = vmatpush1.bf16.msra.mxu0 0
        %1124 = vmatprep.subr.bf16.mxu0 0
        %1125 = vmatpush1.bf16.msra.mxu0 0
        %1126 = vmatprep.subr.bf16.mxu0 0
        %1127 = vmatpush1.bf16.msra.mxu0 0
        %1128 = vmatprep.subr.bf16.mxu0 0
        %1129 = vmatpush1.bf16.msra.mxu0 0
        %1130 = vmatprep.subr.bf16.mxu0 0
        %1131 = vmatpush1.bf16.msra.mxu0 %v632
        %1132 = vmatprep.subr.bf16.mxu0 0
        %1133 = vmatpush2.bf16.msra.mxu0 0
        %1134 = vmatprep.subr.bf16.mxu0 0
        %1135 = vmatpush2.bf16.msra.mxu0 0
        %1136 = vmatprep.subr.bf16.mxu0 0
        %1137 = vmatpush2.bf16.msra.mxu0 0
        %1138 = vmatprep.subr.bf16.mxu0 0
        %1139 = vmatpush2.bf16.msra.mxu0 0
        %1140 = vmatprep.subr.bf16.mxu0 0
        %1141 = vmatpush2.bf16.msra.mxu0 0
        %1142 = vmatprep.subr.bf16.mxu0 0
        %1143 = vmatpush2.bf16.msra.mxu0 0
        %1144 = vmatprep.subr.bf16.mxu0 0
        %1145 = vmatpush2.bf16.msra.mxu0 0
        %1146 = vmatprep.subr.bf16.mxu0 0
        %1147 = vmatpush2.bf16.msra.mxu0 0
        %1148 = vmatprep.mubr.bf16.mxu0 0
        %1149 = vmatmul.mubr.bf16.gmra.mxu0 %v1114
        %v1150 = vpop.f32.mrf.mxu0
        %v1151 = vadd.f32 %v1110, %v1150
        %v1152 = vpop.f32.mrf.mxu0
        %v1153 = vpop.f32.mrf.mxu0
        %v1154 = vpop.f32.mrf.mxu0
        %1155 = vdwg.mxu0
        %v1156 = vsub.f32 0.0, %v1151
        %v1157 = vmul.f32 %v1156, 1.442695
        %v1158 = vpow.pop %v1157
        %v1159 = vadd.f32 %v1158, 1.0
        %v1160 = vrcp.pop %v1159
        %v1161 = vmul.f32 1.0, %v1160
        %v1162 = vtanh.pop %v1151
        %v1163 = vmul.f32 %v1161, %v1078
        %1165 = vrot.lane.b32.xlu0 %v1162, 96
        %v1166 = vpop.permute.xlu0 %1165
        %v1168 = vmul.f32 %v1161, %v1166
        %1170 = vrot.lane.b32.xlu0 %v1168, 16
        %v1171 = vpop.permute.xlu0 %1170
        %v1173 = vadd.f32 %v1163, %v1171
        %v1174 = vtanh.pop %v1173
        %1176 = vrot.lane.b32.xlu0 %v1174, 32
        %v1177 = vpop.permute.xlu0 %1176
        %v1179 = vmul.f32 %v1161, %v1177
        %v1180 = vpack.c.bf16 %v1179, %v1179
        %v1183 = vunpack.c.l.s4 1966171168
        %v1184 = vunpack.c.0.s8 %v1183
        %v1185 = vlaneseq
        %v1186 = vshrl.u32 %v1185, 7
        %v1187 = vsub.s32 %v1184, %v1186
        %v1188 = vrot.slane %v1180, %v1187
        %v1190 = vunpack.c.l.s4 1966171168
        %v1191 = vunpack.c.0.s8 %v1190
        %v1192 = vlaneseq
        %v1193 = vshrl.u32 %v1192, 7
        %v1194 = vsub.s32 %v1191, %v1193
        %v1195 = vrot.slane %v1188, %v1194
        %1196 = vrot.lane.b32.xlu0 %v1195, 80
        %v1197 = vpop.permute.xlu0 %1196
        %s1199 = scalar_lea.vmem %s498, %s1107 [#allocation13]
        %1200 = vst.msk [vmem:[%s1199] sm:$0x1] %vm726, %v1197
        %s1201 = smul.u32 %s39, 4294967291
        %s1202 = sadd.s32 %s1201, 6
        %s1203 = smul.u32 %s1202, 2
        %s1204 = scalar_lea.vmem [#allocation4], %s1203
        %v1205 = vld [vmem:[%s1204] sm:$0x3]
        %1206 = vrot.lane.b32.xlu0 %v1180, 80
        %v1207 = vpop.permute.xlu0 %1206
        %v1209 = vsel %vm634, %v1207, 0
        %1211 = vmatprep.subr.bf16.mxu0 0
        %1212 = vmatpush1.bf16.msra.mxu0 0
        %1213 = vmatprep.subr.bf16.mxu0 0
        %1214 = vmatpush1.bf16.msra.mxu0 0
        %1215 = vmatprep.subr.bf16.mxu0 0
        %1216 = vmatpush1.bf16.msra.mxu0 0
        %1217 = vmatprep.subr.bf16.mxu0 0
        %1218 = vmatpush1.bf16.msra.mxu0 0
        %1219 = vmatprep.subr.bf16.mxu0 0
        %1220 = vmatpush1.bf16.msra.mxu0 0
        %1221 = vmatprep.subr.bf16.mxu0 0
        %1222 = vmatpush1.bf16.msra.mxu0 0
        %1223 = vmatprep.subr.bf16.mxu0 0
        %1224 = vmatpush1.bf16.msra.mxu0 0
        %1225 = vmatprep.subr.bf16.mxu0 0
        %1226 = vmatpush1.bf16.msra.mxu0 %v632
        %1227 = vmatprep.subr.bf16.mxu0 0
        %1228 = vmatpush2.bf16.msra.mxu0 0
        %1229 = vmatprep.subr.bf16.mxu0 0
        %1230 = vmatpush2.bf16.msra.mxu0 0
        %1231 = vmatprep.subr.bf16.mxu0 0
        %1232 = vmatpush2.bf16.msra.mxu0 0
        %1233 = vmatprep.subr.bf16.mxu0 0
        %1234 = vmatpush2.bf16.msra.mxu0 0
        %1235 = vmatprep.subr.bf16.mxu0 0
        %1236 = vmatpush2.bf16.msra.mxu0 0
        %1237 = vmatprep.subr.bf16.mxu0 0
        %1238 = vmatpush2.bf16.msra.mxu0 0
        %1239 = vmatprep.subr.bf16.mxu0 0
        %1240 = vmatpush2.bf16.msra.mxu0 0
        %1241 = vmatprep.subr.bf16.mxu0 0
        %1242 = vmatpush2.bf16.msra.mxu0 0
        %1243 = vmatprep.mubr.bf16.mxu0 0
        %1244 = vmatmul.mubr.bf16.gmra.mxu0 %v1209
        %v1245 = vpop.f32.mrf.mxu0
        %v1246 = vadd.f32 %v1205, %v1245
        %v1247 = vpop.f32.mrf.mxu0
        %v1248 = vpop.f32.mrf.mxu0
        %v1249 = vpop.f32.mrf.mxu0
        %1250 = vdwg.mxu0
        %v1251 = vsub.f32 0.0, %v1246
        %v1252 = vmul.f32 %v1251, 1.442695
        %v1253 = vpow.pop %v1252
        %v1254 = vadd.f32 %v1253, 1.0
        %v1255 = vrcp.pop %v1254
        %v1256 = vmul.f32 1.0, %v1255
        %v1257 = vtanh.pop %v1246
        %v1258 = vmul.f32 %v1256, %v1173
        %1260 = vrot.lane.b32.xlu0 %v1257, 96
        %v1261 = vpop.permute.xlu0 %1260
        %v1263 = vmul.f32 %v1256, %v1261
        %1265 = vrot.lane.b32.xlu0 %v1263, 16
        %v1266 = vpop.permute.xlu0 %1265
        %v1268 = vadd.f32 %v1258, %v1266
        %v1269 = vtanh.pop %v1268
        %1271 = vrot.lane.b32.xlu0 %v1269, 32
        %v1272 = vpop.permute.xlu0 %1271
        %v1274 = vmul.f32 %v1256, %v1272
        %v1275 = vpack.c.bf16 %v1274, %v1274
        %v1278 = vunpack.c.l.s4 1966171168
        %v1279 = vunpack.c.0.s8 %v1278
        %v1280 = vlaneseq
        %v1281 = vshrl.u32 %v1280, 7
        %v1282 = vsub.s32 %v1279, %v1281
        %v1283 = vrot.slane %v1275, %v1282
        %v1285 = vunpack.c.l.s4 1966171168
        %v1286 = vunpack.c.0.s8 %v1285
        %v1287 = vlaneseq
        %v1288 = vshrl.u32 %v1287, 7
        %v1289 = vsub.s32 %v1286, %v1288
        %v1290 = vrot.slane %v1283, %v1289
        %1291 = vrot.lane.b32.xlu0 %v1290, 80
        %v1292 = vpop.permute.xlu0 %1291
        %s1294 = scalar_lea.vmem %s498, %s1202 [#allocation13]
        %1295 = vst.msk [vmem:[%s1294] sm:$0x1] %vm726, %v1292
        %s1296 = smul.u32 %s39, 4294967289
        %s1297 = sadd.s32 %s1296, 7
        %s1298 = smul.u32 %s1297, 2
        %s1299 = scalar_lea.vmem [#allocation4], %s1298
        %v1300 = vld [vmem:[%s1299] sm:$0x3]
        %1301 = vrot.lane.b32.xlu0 %v1275, 80
        %v1302 = vpop.permute.xlu0 %1301
        %v1304 = vsel %vm634, %v1302, 0
        %1306 = vmatprep.subr.bf16.mxu0 0
        %1307 = vmatpush1.bf16.msra.mxu0 0
        %1308 = vmatprep.subr.bf16.mxu0 0
        %1309 = vmatpush1.bf16.msra.mxu0 0
        %1310 = vmatprep.subr.bf16.mxu0 0
        %1311 = vmatpush1.bf16.msra.mxu0 0
        %1312 = vmatprep.subr.bf16.mxu0 0
        %1313 = vmatpush1.bf16.msra.mxu0 0
        %1314 = vmatprep.subr.bf16.mxu0 0
        %1315 = vmatpush1.bf16.msra.mxu0 0
        %1316 = vmatprep.subr.bf16.mxu0 0
        %1317 = vmatpush1.bf16.msra.mxu0 0
        %1318 = vmatprep.subr.bf16.mxu0 0
        %1319 = vmatpush1.bf16.msra.mxu0 0
        %1320 = vmatprep.subr.bf16.mxu0 0
        %1321 = vmatpush1.bf16.msra.mxu0 %v632
        %1322 = vmatprep.subr.bf16.mxu0 0
        %1323 = vmatpush2.bf16.msra.mxu0 0
        %1324 = vmatprep.subr.bf16.mxu0 0
        %1325 = vmatpush2.bf16.msra.mxu0 0
        %1326 = vmatprep.subr.bf16.mxu0 0
        %1327 = vmatpush2.bf16.msra.mxu0 0
        %1328 = vmatprep.subr.bf16.mxu0 0
        %1329 = vmatpush2.bf16.msra.mxu0 0
        %1330 = vmatprep.subr.bf16.mxu0 0
        %1331 = vmatpush2.bf16.msra.mxu0 0
        %1332 = vmatprep.subr.bf16.mxu0 0
        %1333 = vmatpush2.bf16.msra.mxu0 0
        %1334 = vmatprep.subr.bf16.mxu0 0
        %1335 = vmatpush2.bf16.msra.mxu0 0
        %1336 = vmatprep.subr.bf16.mxu0 0
        %1337 = vmatpush2.bf16.msra.mxu0 0
        %1338 = vmatprep.mubr.bf16.mxu0 0
        %1339 = vmatmul.mubr.bf16.gmra.mxu0 %v1304
        %v1340 = vpop.f32.mrf.mxu0
        %v1341 = vadd.f32 %v1300, %v1340
        %v1342 = vpop.f32.mrf.mxu0
        %v1343 = vpop.f32.mrf.mxu0
        %v1344 = vpop.f32.mrf.mxu0
        %1345 = vdwg.mxu0
        %v1346 = vsub.f32 0.0, %v1341
        %v1347 = vmul.f32 %v1346, 1.442695
        %v1348 = vpow.pop %v1347
        %v1349 = vadd.f32 %v1348, 1.0
        %v1350 = vrcp.pop %v1349
        %v1351 = vmul.f32 1.0, %v1350
        %v1352 = vtanh.pop %v1341
        %v1353 = vmul.f32 %v1351, %v1268
        %1355 = vrot.lane.b32.xlu0 %v1352, 96
        %v1356 = vpop.permute.xlu0 %1355
        %v1358 = vmul.f32 %v1351, %v1356
        %1360 = vrot.lane.b32.xlu0 %v1358, 16
        %v1361 = vpop.permute.xlu0 %1360
        %v1363 = vadd.f32 %v1353, %v1361
        %v1364 = vtanh.pop %v1363
        %1366 = vrot.lane.b32.xlu0 %v1364, 32
        %v1367 = vpop.permute.xlu0 %1366
        %v1369 = vmul.f32 %v1351, %v1367
        %v1370 = vpack.c.bf16 %v1369, %v1369
        %v1373 = vunpack.c.l.s4 1966171168
        %v1374 = vunpack.c.0.s8 %v1373
        %v1375 = vlaneseq
        %v1376 = vshrl.u32 %v1375, 7
        %v1377 = vsub.s32 %v1374, %v1376
        %v1378 = vrot.slane %v1370, %v1377
        %v1380 = vunpack.c.l.s4 1966171168
        %v1381 = vunpack.c.0.s8 %v1380
        %v1382 = vlaneseq
        %v1383 = vshrl.u32 %v1382, 7
        %v1384 = vsub.s32 %v1381, %v1383
        %v1385 = vrot.slane %v1378, %v1384
        %1386 = vrot.lane.b32.xlu0 %v1385, 80
        %v1387 = vpop.permute.xlu0 %1386
        %s1389 = scalar_lea.vmem %s498, %s1297 [#allocation13]
        %1390 = vst.msk [vmem:[%s1389] sm:$0x1] %vm726, %v1387
        %1392 = vrot.lane.b32.xlu0 %v1369, 80
        %v1393 = vpop.permute.xlu0 %1392
        %vm1395 = vcmask 123904
        %1396 = vst.msk [vmem:[#allocation2] sm:$0x3] %vm1395, %v1393
        %1398 = vrot.lane.b32.xlu0 %v1363, 112
        %v1399 = vpop.permute.xlu0 %1398
        %1401 = vst.msk [vmem:[#allocation3] sm:$0x3] %vm1395, %v1399
        // Predicated region
        $region65: #{tpu_custom_call.1} parent=43 // pred_check
          %p1402 = pneg %p532
        $region66: #{tpu_custom_call.1} parent=43 // pred_check_branch
          %1404 = sbr.rel (%p1402) target = $region68
        $region67: #{tpu_custom_call.1} parent=43 // pred_region
          %1405 = vst.msk [vmem:[%s505] sm:$0x3] %vm1395, %v1393
          %1406 = vst.msk [vmem:[%s512] sm:$0x3] %vm1395, %v1399
        $region68: #{tpu_custom_call.1} parent=43 // pred_fallthru
          _
        %s1407 = sand.u32 %s229, 1
        %s1408 = scalar_lea.sflag [#allocation7], %s1407
        %s1409 = sand.u32 %s229, 1
        %s1410 = smul.addr %s1409, 8
        %s1411 = scalar_lea.vmem [#allocation13], %s1410
        %s1412 = sand.u32 %s35, 1
        %s1413 = scalar_lea.sflag [#allocation15], %s1412
        %s1414 = sand.u32 %s255, 1
        %s1415 = smul.addr %s1414, 2
        %s1416 = scalar_lea.vmem [#allocation14], %s1415
        %s1417 = sand.u32 %s35, 1
        %s1418 = scalar_lea.sflag [#allocation15], %s1417
        %s1419 = sand.u32 %s281, 1
        %s1420 = smul.addr %s1419, 2
        %s1421 = scalar_lea.vmem [#allocation16], %s1420
        // Predicated region
        $region69: #{tpu_custom_call.1} parent=43 // pred_check
          %p1422 = pneg %p239
        $region70: #{tpu_custom_call.1} parent=43 // pred_check_branch
          %1424 = sbr.rel (%p1422) target = $region72
        $region71: #{tpu_custom_call.1} parent=43 // pred_region
          %s1425 = smul.u32 %s40, 2
          %s1426 = ssub.s32 0, %s1425
          %s1427 = smul.u32 %s39, %s1426
          %s1428 = sadd.s32 %s40, %s1427
          %s1429 = smul.u32 8, %s1428
          %s1431 = ssub.s32 128, 128
          %1432 = vsyncadd %s1408, %s1431
          %s1433 = smul.addr %s39, 8
          %s1434 = sadd.s32 %s1429, %s1433
          %s1435 = smul.addr %s1434, 16
          %s1436 = scalar_lea.hbm %s6, %s1435
          %s1437 = sshll.u32 %s1411, 4
          %s1438 = int_to_ptr.vmem [resolvable:$true] %s1437
          %1443 = dma.vmem_to_hbm [thread:$0]  %s1438, 128, %s1436, %s1408, 16, 16, 1
        $region72: #{tpu_custom_call.1} parent=43 // pred_fallthru
          _
        // Predicated region
        $region73: #{tpu_custom_call.1} parent=43 // pred_check
          %p1444 = pneg %p265
        $region74: #{tpu_custom_call.1} parent=43 // pred_check_branch
          %1446 = sbr.rel (%p1444) target = $region76
        $region75: #{tpu_custom_call.1} parent=43 // pred_region
          %s1448 = ssub.s32 32, 32
          %1449 = vsyncadd %s1413, %s1448
          %s1450 = smul.addr %s39, 32
          %s1451 = scalar_lea.hbm %s7, %s1450
          %s1453 = sshll.u32 %s1416, 4
          %s1454 = int_to_ptr.vmem [resolvable:$true] %s1453
          %1456 = dma.vmem_to_hbm [thread:$0]  %s1454, 32, %s1451, %s1413
        $region76: #{tpu_custom_call.1} parent=43 // pred_fallthru
          _
        // Predicated region
        $region77: #{tpu_custom_call.1} parent=43 // pred_check
          %p1457 = pneg %p291
        $region78: #{tpu_custom_call.1} parent=43 // pred_check_branch
          %1459 = sbr.rel (%p1457) target = $region80
        $region79: #{tpu_custom_call.1} parent=43 // pred_region
          %s1461 = ssub.s32 32, 32
          %1462 = vsyncadd %s1418, %s1461
          %s1463 = smul.addr %s39, 32
          %s1464 = scalar_lea.hbm %s8, %s1463
          %s1466 = sshll.u32 %s1421, 4
          %s1467 = int_to_ptr.vmem [resolvable:$true] %s1466
          %1469 = dma.vmem_to_hbm [thread:$0]  %s1467, 32, %s1464, %s1418
        $region80: #{tpu_custom_call.1} parent=43 // pred_fallthru
          _
      $region44: #{tpu_custom_call.1} parent=5 // pred_fallthru
        _
      %p1470 = scmp.le.s32.totalorder 2, %s30
      // Predicated region
      $region81: #{tpu_custom_call.1} parent=5 // pred_check
        %p1471 = pneg %p1470
      $region82: #{tpu_custom_call.1} parent=5 // pred_check_branch
        %1473 = sbr.rel (%p1471) target = $region84
      $region83: #{tpu_custom_call.1} parent=5 // pred_region
        %s1474 = ssub.s32 %s30, 2
        // Predicated region
        $region85: #{tpu_custom_call.1} parent=83 // pred_check
          %p1475 = pneg %p245
        $region86: #{tpu_custom_call.1} parent=83 // pred_check_branch
          %1477 = sbr.rel (%p1475) target = $region88
        $region87: #{tpu_custom_call.1} parent=83 // pred_region
          %s1478 = sand.u32 %s230, 1
          %s1479 = scalar_lea.sflag [#allocation7], %s1478
          %s1480 = sand.u32 %s230, 1
          %s1481 = smul.addr %s1480, 8
          %s1482 = scalar_lea.vmem [#allocation13], %s1481
          %1483 = dma.done %s1479, 128
        $region88: #{tpu_custom_call.1} parent=83 // pred_fallthru
          _
        // Predicated region
        $region89: #{tpu_custom_call.1} parent=83 // pred_check
          %p1484 = pneg %p271
        $region90: #{tpu_custom_call.1} parent=83 // pred_check_branch
          %1486 = sbr.rel (%p1484) target = $region92
        $region91: #{tpu_custom_call.1} parent=83 // pred_region
          %s1487 = sand.u32 %s36, 1
          %s1488 = scalar_lea.sflag [#allocation15], %s1487
          %s1489 = sand.u32 %s256, 1
          %s1490 = smul.addr %s1489, 2
          %s1491 = scalar_lea.vmem [#allocation14], %s1490
          %1492 = dma.done %s1488, 32
        $region92: #{tpu_custom_call.1} parent=83 // pred_fallthru
          _
        // Predicated region
        $region93: #{tpu_custom_call.1} parent=83 // pred_check
          %p1493 = pneg %p297
        $region94: #{tpu_custom_call.1} parent=83 // pred_check_branch
          %1495 = sbr.rel (%p1493) target = $region96
        $region95: #{tpu_custom_call.1} parent=83 // pred_region
          %s1496 = sand.u32 %s36, 1
          %s1497 = scalar_lea.sflag [#allocation15], %s1496
          %s1498 = sand.u32 %s282, 1
          %s1499 = smul.addr %s1498, 2
          %s1500 = scalar_lea.vmem [#allocation16], %s1499
          %1501 = dma.done %s1497, 32
        $region96: #{tpu_custom_call.1} parent=83 // pred_fallthru
          _
      $region84: #{tpu_custom_call.1} parent=5 // pred_fallthru
        _
    $region6: #{tpu_custom_call.1} parent=1 // loop_footer
      %s34 = sadd.s32 1, %s30
    $region7: #{tpu_custom_call.1} parent=1 // loop_footer_branch
      %29 = sbr.rel target = $region3
    $region8: #{tpu_custom_call.1} parent=1 // loop_exit
      _
    %1502 = vsyncpa [#allocation6], 1
    %s1503 = scalar_lea.sflag [#allocation6], 1
    %1504 = vsyncpa %s1503, 1
    %1505 = vsyncpa [#allocation9], 1
    %s1506 = scalar_lea.sflag [#allocation9], 1
    %1507 = vsyncpa %s1506, 1
    %1508 = vsyncpa [#allocation12], 1
    %s1509 = scalar_lea.sflag [#allocation12], 1
    %1510 = vsyncpa %s1509, 1
    %1511 = vsyncpa [#allocation7], 1
    %s1512 = scalar_lea.sflag [#allocation7], 1
    %1513 = vsyncpa %s1512, 1
    %1514 = vsyncpa [#allocation15], 1
    %s1515 = scalar_lea.sflag [#allocation15], 1
    %1516 = vsyncpa %s1515, 1

</llo_original>
